<compile_context>
chip_gen: v7x
topology: tpu7x:2x2x1
jax: 0.10.0
libtpu: 0.0.40
codegen_flags: <defaults>
</compile_context>

<pallas_src>
import math
import jax
import jax.numpy as jnp
from jax.experimental import pallas as pl
from jax.experimental.pallas import tpu as pltpu


# ----------------------------------------------------------------------------
# Parameter init (deterministic, PyTorch-default-style uniform(-k, k))
# ----------------------------------------------------------------------------
def init_params(key, n_features, hidden_size, num_layers, num_classes):
    params = {}
    keys = jax.random.split(key, num_layers * 4 + 4)
    idx = 0
    k_lstm = 1.0 / math.sqrt(hidden_size)
    for l in range(num_layers):
        in_size = n_features if l == 0 else hidden_size
        w_ih = jax.random.uniform(keys[idx], (4 * hidden_size, in_size),
                                  minval=-k_lstm, maxval=k_lstm, dtype=jnp.float32); idx += 1
        w_hh = jax.random.uniform(keys[idx], (4 * hidden_size, hidden_size),
                                  minval=-k_lstm, maxval=k_lstm, dtype=jnp.float32); idx += 1
        b_ih = jax.random.uniform(keys[idx], (4 * hidden_size,),
                                  minval=-k_lstm, maxval=k_lstm, dtype=jnp.float32); idx += 1
        b_hh = jax.random.uniform(keys[idx], (4 * hidden_size,),
                                  minval=-k_lstm, maxval=k_lstm, dtype=jnp.float32); idx += 1
        params[f"lstm_l{l}"] = (w_ih, w_hh, b_ih, b_hh)

    k_fc = 1.0 / math.sqrt(hidden_size)
    w_fc = jax.random.uniform(keys[idx], (hidden_size, hidden_size),
                              minval=-k_fc, maxval=k_fc, dtype=jnp.float32); idx += 1
    b_fc = jax.random.uniform(keys[idx], (hidden_size,),
                              minval=-k_fc, maxval=k_fc, dtype=jnp.float32); idx += 1
    w_fc2 = jax.random.uniform(keys[idx], (num_classes, hidden_size),
                               minval=-k_fc, maxval=k_fc, dtype=jnp.float32); idx += 1
    b_fc2 = jax.random.uniform(keys[idx], (num_classes,),
                               minval=-k_fc, maxval=k_fc, dtype=jnp.float32); idx += 1
    params["fc"] = (w_fc, b_fc)
    params["fc2"] = (w_fc2, b_fc2)
    return params


# ----------------------------------------------------------------------------
# Pallas kernel wrapper
# ----------------------------------------------------------------------------
def lstm_classifier_forward(x, params, *, num_layers, hidden_size, num_classes):
    B, T, F = x.shape
    H = hidden_size
    G = 4 * H
    BP = max(8, B)          # pad batch to a full sublane group
    CP = max(128, num_classes)  # lane-dense logits (unmasked final store)

    # time-major, batch-padded, flattened to (T*BP, F) so the layer-0 input
    # projection is one big matmul and per-step slabs are static row slices.
    x_tm = jnp.zeros((T, BP, F), jnp.float32).at[:, :B, :].set(
        jnp.transpose(x.astype(jnp.float32), (1, 0, 2)))
    x_flat = x_tm.reshape(T * BP, F)

    # pre-transpose weights so the kernel does plain (rows,K)@(K,N) matmuls
    weight_args = []
    for l in range(num_layers):
        w_ih, w_hh, b_ih, b_hh = params[f"lstm_l{l}"]
        weight_args.append(jnp.transpose(w_ih))                      # (K, 4H)
        weight_args.append(jnp.transpose(w_hh))                      # (H, 4H)
        weight_args.append((b_ih + b_hh).reshape(1, G))              # (1, 4H)
    w_fc, b_fc = params["fc"]
    w_fc2, b_fc2 = params["fc2"]
    weight_args.append(jnp.transpose(w_fc))                          # (H, H)
    weight_args.append(b_fc.reshape(1, H))                           # (1, H)
    # pad fc2 to 128 output lanes -> unmasked (lane-dense) final store
    w_fc2_p = jnp.zeros((H, CP), jnp.float32).at[:, :num_classes].set(
        jnp.transpose(w_fc2))
    b_fc2_p = jnp.zeros((1, CP), jnp.float32).at[:, :num_classes].set(
        b_fc2.reshape(1, num_classes))
    weight_args.append(w_fc2_p)                                      # (H, CP)
    weight_args.append(b_fc2_p)                                      # (1, CP)

    n_w = 3 * num_layers + 4

    def kernel(x_ref, *args):
        w_refs = args[:n_w]
        out_ref = args[n_w]

        # layer-outer / time-inner recurrence; h/c and per-step outputs are
        # plain loop-carried values (registers), never VMEM scratch.
        inp_flat = x_ref[...]                                        # (T*BP, K)
        h = jnp.zeros((BP, H), jnp.float32)
        for l in range(num_layers):
            w_ih_v = w_refs[3 * l][...]                              # (K, 4H)
            w_hh_v = w_refs[3 * l + 1][...]                          # (H, 4H)
            b_v = w_refs[3 * l + 2][...]                             # (1, 4H)

            # hoisted input projection for ALL timesteps of this layer
            proj = jnp.dot(inp_flat, w_ih_v,
                           preferred_element_type=jnp.float32) + b_v  # (T*BP, 4H)

            h = jnp.zeros((BP, H), jnp.float32)
            c = jnp.zeros((BP, H), jnp.float32)
            outs = []
            for t in range(T):
                gates = (proj[t * BP:(t + 1) * BP, :]
                         + jnp.dot(h, w_hh_v,
                                   preferred_element_type=jnp.float32))  # (BP, 4H)
                # two full-width EUP passes instead of four masked quarters
                sig_all = jax.nn.sigmoid(gates)
                tanh_all = jnp.tanh(gates)
                # PyTorch gate order: i, f, g, o
                i_g = sig_all[:, 0 * H:1 * H]
                f_g = sig_all[:, 1 * H:2 * H]
                g_g = tanh_all[:, 2 * H:3 * H]
                o_g = sig_all[:, 3 * H:4 * H]
                c = f_g * c + i_g * g_g
                h = o_g * jnp.tanh(c)
                if l < num_layers - 1:
                    outs.append(h)
            if l < num_layers - 1:
                # feed the full hidden sequence to the next layer's projection
                inp_flat = jnp.concatenate(outs, axis=0)             # (T*BP, H)

        # out[:, -1, :] of the top layer -> fc -> relu -> fc2 (padded lanes)
        w_fc_v = w_refs[3 * num_layers][...]
        b_fc_v = w_refs[3 * num_layers + 1][...]
        w_fc2_v = w_refs[3 * num_layers + 2][...]
        b_fc2_v = w_refs[3 * num_layers + 3][...]
        z = jnp.maximum(
            jnp.dot(h, w_fc_v, preferred_element_type=jnp.float32) + b_fc_v, 0.0)
        logits = jnp.dot(z, w_fc2_v, preferred_element_type=jnp.float32) + b_fc2_v
        out_ref[...] = logits.astype(out_ref.dtype)                  # (BP, CP)

    n_inputs = 1 + len(weight_args)
    out_padded = pl.pallas_call(
        kernel,
        out_shape=jax.ShapeDtypeStruct((BP, CP), jnp.float32),
        in_specs=[pl.BlockSpec(memory_space=pltpu.MemorySpace.VMEM)] * n_inputs,
        out_specs=pl.BlockSpec(memory_space=pltpu.MemorySpace.VMEM),
    )(x_flat, *weight_args)
    return out_padded[:B, :num_classes]


# ----------------------------------------------------------------------------
# Pure-JAX reference (mirrors the PyTorch forward, eval mode)
# ----------------------------------------------------------------------------
def reference_forward(x, params, *, num_layers, hidden_size, num_classes):
    B, T, F = x.shape
    H = hidden_size
    h = [jnp.zeros((B, H), jnp.float32) for _ in range(num_layers)]
    c = [jnp.zeros((B, H), jnp.float32) for _ in range(num_layers)]
    for t in range(T):
        inp = x[:, t, :].astype(jnp.float32)
        for l in range(num_layers):
            w_ih, w_hh, b_ih, b_hh = params[f"lstm_l{l}"]
            gates = inp @ w_ih.T + b_ih + h[l] @ w_hh.T + b_hh
            i_g = jax.nn.sigmoid(gates[:, 0 * H:1 * H])
            f_g = jax.nn.sigmoid(gates[:, 1 * H:2 * H])
            g_g = jnp.tanh(gates[:, 2 * H:3 * H])
            o_g = jax.nn.sigmoid(gates[:, 3 * H:4 * H])
            c[l] = f_g * c[l] + i_g * g_g
            h[l] = o_g * jnp.tanh(c[l])
            inp = h[l]
    w_fc, b_fc = params["fc"]
    w_fc2, b_fc2 = params["fc2"]
    z = jnp.maximum(h[-1] @ w_fc.T + b_fc, 0.0)
    return z @ w_fc2.T + b_fc2


if __name__ == "__main__":
    # small shapes consistent with the module's forward
    batch, seq_len, n_features = 2, 8, 4
    hidden_size, num_layers, num_classes = 32, 2, 2

    key = jax.random.PRNGKey(0)
    pkey, xkey = jax.random.split(key)
    params = init_params(pkey, n_features, hidden_size, num_layers, num_classes)
    x = jax.random.normal(xkey, (batch, seq_len, n_features), dtype=jnp.float32)

    out = lstm_classifier_forward(
        x, params,
        num_layers=num_layers, hidden_size=hidden_size, num_classes=num_classes)
    out = jax.block_until_ready(out)

    ref = reference_forward(
        x, params,
        num_layers=num_layers, hidden_size=hidden_size, num_classes=num_classes)

    assert out.shape == (batch, num_classes), out.shape
    if not jnp.allclose(out, ref, rtol=1e-4, atol=1e-4):
        raise AssertionError(f"mismatch: kernel={out}, ref={ref}")
    print("KERNEL_OK")
</pallas_src>

<mosaic_0001>
module attributes {stable_mosaic.version = 11 : i64} {
  func.func @kernel(%arg0: memref<64x4xf32, #tpu.memory_space<vmem>>, %arg1: memref<4x128xf32, #tpu.memory_space<vmem>>, %arg2: memref<32x128xf32, #tpu.memory_space<vmem>>, %arg3: memref<1x128xf32, #tpu.memory_space<vmem>>, %arg4: memref<32x128xf32, #tpu.memory_space<vmem>>, %arg5: memref<32x128xf32, #tpu.memory_space<vmem>>, %arg6: memref<1x128xf32, #tpu.memory_space<vmem>>, %arg7: memref<32x32xf32, #tpu.memory_space<vmem>>, %arg8: memref<1x32xf32, #tpu.memory_space<vmem>>, %arg9: memref<32x128xf32, #tpu.memory_space<vmem>>, %arg10: memref<1x128xf32, #tpu.memory_space<vmem>>, %arg11: memref<8x128xf32, #tpu.memory_space<vmem>>) attributes {dimension_semantics = [], scalar_prefetch = 0 : i64, scratch_operands = 0 : i64, tpu.core_type = #tpu.core_type<tc>} {
    %c0 = arith.constant 0 : index
    %c0_0 = arith.constant 0 : index
    %0 = vector.load %arg0[%c0, %c0_0] : memref<64x4xf32, #tpu.memory_space<vmem>>, vector<64x4xf32>
    %c0_1 = arith.constant 0 : index
    %c0_2 = arith.constant 0 : index
    %1 = vector.load %arg1[%c0_1, %c0_2] : memref<4x128xf32, #tpu.memory_space<vmem>>, vector<4x128xf32>
    %c0_3 = arith.constant 0 : index
    %c0_4 = arith.constant 0 : index
    %2 = vector.load %arg2[%c0_3, %c0_4] : memref<32x128xf32, #tpu.memory_space<vmem>>, vector<32x128xf32>
    %c0_5 = arith.constant 0 : index
    %c0_6 = arith.constant 0 : index
    %3 = vector.load %arg3[%c0_5, %c0_6] : memref<1x128xf32, #tpu.memory_space<vmem>>, vector<1x128xf32>
    %cst = arith.constant dense<0.000000e+00> : vector<64x128xf32>
    %4 = tpu.matmul %0, %1, %cst {dimension_numbers = #tpu.dot_dimension_numbers<[1], [0], [0], [1], [0, 0, 1, 1], [], []>} : vector<64x4xf32>, vector<4x128xf32>, vector<64x128xf32> -> vector<64x128xf32>
    %5 = vector.broadcast %3 : vector<1x128xf32> to vector<64x128xf32>
    %6 = arith.addf %4, %5 : vector<64x128xf32>
    %cst_7 = arith.constant 0.000000e+00 : f32
    %7 = vector.broadcast %cst_7 : f32 to vector<8x32xf32>
    %cst_8 = arith.constant 0.000000e+00 : f32
    %8 = vector.broadcast %cst_8 : f32 to vector<8x32xf32>
    %9 = vector.extract_strided_slice %6 {offsets = [0, 0], sizes = [8, 128], strides = [1, 1]} : vector<64x128xf32> to vector<8x128xf32>
    %cst_9 = arith.constant dense<0.000000e+00> : vector<8x128xf32>
    %10 = tpu.matmul %7, %2, %cst_9 {dimension_numbers = #tpu.dot_dimension_numbers<[1], [0], [0], [1], [0, 0, 1, 1], [], []>} : vector<8x32xf32>, vector<32x128xf32>, vector<8x128xf32> -> vector<8x128xf32>
    %11 = arith.addf %9, %10 : vector<8x128xf32>
    %12 = arith.negf %11 : vector<8x128xf32>
    %13 = math.exp %12 : vector<8x128xf32>
    %cst_10 = arith.constant 1.000000e+00 : f32
    %14 = vector.broadcast %cst_10 : f32 to vector<8x128xf32>
    %15 = arith.addf %14, %13 : vector<8x128xf32>
    %16 = arith.divf %14, %15 : vector<8x128xf32>
    %17 = math.tanh %11 : vector<8x128xf32>
    %18 = vector.extract_strided_slice %16 {offsets = [0, 0], sizes = [8, 32], strides = [1, 1]} : vector<8x128xf32> to vector<8x32xf32>
    %19 = vector.extract_strided_slice %16 {offsets = [0, 32], sizes = [8, 32], strides = [1, 1]} : vector<8x128xf32> to vector<8x32xf32>
    %20 = vector.extract_strided_slice %17 {offsets = [0, 64], sizes = [8, 32], strides = [1, 1]} : vector<8x128xf32> to vector<8x32xf32>
    %21 = vector.extract_strided_slice %16 {offsets = [0, 96], sizes = [8, 32], strides = [1, 1]} : vector<8x128xf32> to vector<8x32xf32>
    %22 = arith.mulf %19, %8 : vector<8x32xf32>
    %23 = arith.mulf %18, %20 : vector<8x32xf32>
    %24 = arith.addf %22, %23 : vector<8x32xf32>
    %25 = math.tanh %24 : vector<8x32xf32>
    %26 = arith.mulf %21, %25 : vector<8x32xf32>
    %27 = vector.extract_strided_slice %6 {offsets = [8, 0], sizes = [8, 128], strides = [1, 1]} : vector<64x128xf32> to vector<8x128xf32>
    %cst_11 = arith.constant dense<0.000000e+00> : vector<8x128xf32>
    %28 = tpu.matmul %26, %2, %cst_11 {dimension_numbers = #tpu.dot_dimension_numbers<[1], [0], [0], [1], [0, 0, 1, 1], [], []>} : vector<8x32xf32>, vector<32x128xf32>, vector<8x128xf32> -> vector<8x128xf32>
    %29 = arith.addf %27, %28 : vector<8x128xf32>
    %30 = arith.negf %29 : vector<8x128xf32>
    %31 = math.exp %30 : vector<8x128xf32>
    %cst_12 = arith.constant 1.000000e+00 : f32
    %32 = vector.broadcast %cst_12 : f32 to vector<8x128xf32>
    %33 = arith.addf %32, %31 : vector<8x128xf32>
    %34 = arith.divf %32, %33 : vector<8x128xf32>
    %35 = math.tanh %29 : vector<8x128xf32>
    %36 = vector.extract_strided_slice %34 {offsets = [0, 0], sizes = [8, 32], strides = [1, 1]} : vector<8x128xf32> to vector<8x32xf32>
    %37 = vector.extract_strided_slice %34 {offsets = [0, 32], sizes = [8, 32], strides = [1, 1]} : vector<8x128xf32> to vector<8x32xf32>
    %38 = vector.extract_strided_slice %35 {offsets = [0, 64], sizes = [8, 32], strides = [1, 1]} : vector<8x128xf32> to vector<8x32xf32>
    %39 = vector.extract_strided_slice %34 {offsets = [0, 96], sizes = [8, 32], strides = [1, 1]} : vector<8x128xf32> to vector<8x32xf32>
    %40 = arith.mulf %37, %24 : vector<8x32xf32>
    %41 = arith.mulf %36, %38 : vector<8x32xf32>
    %42 = arith.addf %40, %41 : vector<8x32xf32>
    %43 = math.tanh %42 : vector<8x32xf32>
    %44 = arith.mulf %39, %43 : vector<8x32xf32>
    %45 = vector.extract_strided_slice %6 {offsets = [16, 0], sizes = [8, 128], strides = [1, 1]} : vector<64x128xf32> to vector<8x128xf32>
    %cst_13 = arith.constant dense<0.000000e+00> : vector<8x128xf32>
    %46 = tpu.matmul %44, %2, %cst_13 {dimension_numbers = #tpu.dot_dimension_numbers<[1], [0], [0], [1], [0, 0, 1, 1], [], []>} : vector<8x32xf32>, vector<32x128xf32>, vector<8x128xf32> -> vector<8x128xf32>
    %47 = arith.addf %45, %46 : vector<8x128xf32>
    %48 = arith.negf %47 : vector<8x128xf32>
    %49 = math.exp %48 : vector<8x128xf32>
    %cst_14 = arith.constant 1.000000e+00 : f32
    %50 = vector.broadcast %cst_14 : f32 to vector<8x128xf32>
    %51 = arith.addf %50, %49 : vector<8x128xf32>
    %52 = arith.divf %50, %51 : vector<8x128xf32>
    %53 = math.tanh %47 : vector<8x128xf32>
    %54 = vector.extract_strided_slice %52 {offsets = [0, 0], sizes = [8, 32], strides = [1, 1]} : vector<8x128xf32> to vector<8x32xf32>
    %55 = vector.extract_strided_slice %52 {offsets = [0, 32], sizes = [8, 32], strides = [1, 1]} : vector<8x128xf32> to vector<8x32xf32>
    %56 = vector.extract_strided_slice %53 {offsets = [0, 64], sizes = [8, 32], strides = [1, 1]} : vector<8x128xf32> to vector<8x32xf32>
    %57 = vector.extract_strided_slice %52 {offsets = [0, 96], sizes = [8, 32], strides = [1, 1]} : vector<8x128xf32> to vector<8x32xf32>
    %58 = arith.mulf %55, %42 : vector<8x32xf32>
    %59 = arith.mulf %54, %56 : vector<8x32xf32>
    %60 = arith.addf %58, %59 : vector<8x32xf32>
    %61 = math.tanh %60 : vector<8x32xf32>
    %62 = arith.mulf %57, %61 : vector<8x32xf32>
    %63 = vector.extract_strided_slice %6 {offsets = [24, 0], sizes = [8, 128], strides = [1, 1]} : vector<64x128xf32> to vector<8x128xf32>
    %cst_15 = arith.constant dense<0.000000e+00> : vector<8x128xf32>
    %64 = tpu.matmul %62, %2, %cst_15 {dimension_numbers = #tpu.dot_dimension_numbers<[1], [0], [0], [1], [0, 0, 1, 1], [], []>} : vector<8x32xf32>, vector<32x128xf32>, vector<8x128xf32> -> vector<8x128xf32>
    %65 = arith.addf %63, %64 : vector<8x128xf32>
    %66 = arith.negf %65 : vector<8x128xf32>
    %67 = math.exp %66 : vector<8x128xf32>
    %cst_16 = arith.constant 1.000000e+00 : f32
    %68 = vector.broadcast %cst_16 : f32 to vector<8x128xf32>
    %69 = arith.addf %68, %67 : vector<8x128xf32>
    %70 = arith.divf %68, %69 : vector<8x128xf32>
    %71 = math.tanh %65 : vector<8x128xf32>
    %72 = vector.extract_strided_slice %70 {offsets = [0, 0], sizes = [8, 32], strides = [1, 1]} : vector<8x128xf32> to vector<8x32xf32>
    %73 = vector.extract_strided_slice %70 {offsets = [0, 32], sizes = [8, 32], strides = [1, 1]} : vector<8x128xf32> to vector<8x32xf32>
    %74 = vector.extract_strided_slice %71 {offsets = [0, 64], sizes = [8, 32], strides = [1, 1]} : vector<8x128xf32> to vector<8x32xf32>
    %75 = vector.extract_strided_slice %70 {offsets = [0, 96], sizes = [8, 32], strides = [1, 1]} : vector<8x128xf32> to vector<8x32xf32>
    %76 = arith.mulf %73, %60 : vector<8x32xf32>
    %77 = arith.mulf %72, %74 : vector<8x32xf32>
    %78 = arith.addf %76, %77 : vector<8x32xf32>
    %79 = math.tanh %78 : vector<8x32xf32>
    %80 = arith.mulf %75, %79 : vector<8x32xf32>
    %81 = vector.extract_strided_slice %6 {offsets = [32, 0], sizes = [8, 128], strides = [1, 1]} : vector<64x128xf32> to vector<8x128xf32>
    %cst_17 = arith.constant dense<0.000000e+00> : vector<8x128xf32>
    %82 = tpu.matmul %80, %2, %cst_17 {dimension_numbers = #tpu.dot_dimension_numbers<[1], [0], [0], [1], [0, 0, 1, 1], [], []>} : vector<8x32xf32>, vector<32x128xf32>, vector<8x128xf32> -> vector<8x128xf32>
    %83 = arith.addf %81, %82 : vector<8x128xf32>
    %84 = arith.negf %83 : vector<8x128xf32>
    %85 = math.exp %84 : vector<8x128xf32>
    %cst_18 = arith.constant 1.000000e+00 : f32
    %86 = vector.broadcast %cst_18 : f32 to vector<8x128xf32>
    %87 = arith.addf %86, %85 : vector<8x128xf32>
    %88 = arith.divf %86, %87 : vector<8x128xf32>
    %89 = math.tanh %83 : vector<8x128xf32>
    %90 = vector.extract_strided_slice %88 {offsets = [0, 0], sizes = [8, 32], strides = [1, 1]} : vector<8x128xf32> to vector<8x32xf32>
    %91 = vector.extract_strided_slice %88 {offsets = [0, 32], sizes = [8, 32], strides = [1, 1]} : vector<8x128xf32> to vector<8x32xf32>
    %92 = vector.extract_strided_slice %89 {offsets = [0, 64], sizes = [8, 32], strides = [1, 1]} : vector<8x128xf32> to vector<8x32xf32>
    %93 = vector.extract_strided_slice %88 {offsets = [0, 96], sizes = [8, 32], strides = [1, 1]} : vector<8x128xf32> to vector<8x32xf32>
    %94 = arith.mulf %91, %78 : vector<8x32xf32>
    %95 = arith.mulf %90, %92 : vector<8x32xf32>
    %96 = arith.addf %94, %95 : vector<8x32xf32>
    %97 = math.tanh %96 : vector<8x32xf32>
    %98 = arith.mulf %93, %97 : vector<8x32xf32>
    %99 = vector.extract_strided_slice %6 {offsets = [40, 0], sizes = [8, 128], strides = [1, 1]} : vector<64x128xf32> to vector<8x128xf32>
    %cst_19 = arith.constant dense<0.000000e+00> : vector<8x128xf32>
    %100 = tpu.matmul %98, %2, %cst_19 {dimension_numbers = #tpu.dot_dimension_numbers<[1], [0], [0], [1], [0, 0, 1, 1], [], []>} : vector<8x32xf32>, vector<32x128xf32>, vector<8x128xf32> -> vector<8x128xf32>
    %101 = arith.addf %99, %100 : vector<8x128xf32>
    %102 = arith.negf %101 : vector<8x128xf32>
    %103 = math.exp %102 : vector<8x128xf32>
    %cst_20 = arith.constant 1.000000e+00 : f32
    %104 = vector.broadcast %cst_20 : f32 to vector<8x128xf32>
    %105 = arith.addf %104, %103 : vector<8x128xf32>
    %106 = arith.divf %104, %105 : vector<8x128xf32>
    %107 = math.tanh %101 : vector<8x128xf32>
    %108 = vector.extract_strided_slice %106 {offsets = [0, 0], sizes = [8, 32], strides = [1, 1]} : vector<8x128xf32> to vector<8x32xf32>
    %109 = vector.extract_strided_slice %106 {offsets = [0, 32], sizes = [8, 32], strides = [1, 1]} : vector<8x128xf32> to vector<8x32xf32>
    %110 = vector.extract_strided_slice %107 {offsets = [0, 64], sizes = [8, 32], strides = [1, 1]} : vector<8x128xf32> to vector<8x32xf32>
    %111 = vector.extract_strided_slice %106 {offsets = [0, 96], sizes = [8, 32], strides = [1, 1]} : vector<8x128xf32> to vector<8x32xf32>
    %112 = arith.mulf %109, %96 : vector<8x32xf32>
    %113 = arith.mulf %108, %110 : vector<8x32xf32>
    %114 = arith.addf %112, %113 : vector<8x32xf32>
    %115 = math.tanh %114 : vector<8x32xf32>
    %116 = arith.mulf %111, %115 : vector<8x32xf32>
    %117 = vector.extract_strided_slice %6 {offsets = [48, 0], sizes = [8, 128], strides = [1, 1]} : vector<64x128xf32> to vector<8x128xf32>
    %cst_21 = arith.constant dense<0.000000e+00> : vector<8x128xf32>
    %118 = tpu.matmul %116, %2, %cst_21 {dimension_numbers = #tpu.dot_dimension_numbers<[1], [0], [0], [1], [0, 0, 1, 1], [], []>} : vector<8x32xf32>, vector<32x128xf32>, vector<8x128xf32> -> vector<8x128xf32>
    %119 = arith.addf %117, %118 : vector<8x128xf32>
    %120 = arith.negf %119 : vector<8x128xf32>
    %121 = math.exp %120 : vector<8x128xf32>
    %cst_22 = arith.constant 1.000000e+00 : f32
    %122 = vector.broadcast %cst_22 : f32 to vector<8x128xf32>
    %123 = arith.addf %122, %121 : vector<8x128xf32>
    %124 = arith.divf %122, %123 : vector<8x128xf32>
    %125 = math.tanh %119 : vector<8x128xf32>
    %126 = vector.extract_strided_slice %124 {offsets = [0, 0], sizes = [8, 32], strides = [1, 1]} : vector<8x128xf32> to vector<8x32xf32>
    %127 = vector.extract_strided_slice %124 {offsets = [0, 32], sizes = [8, 32], strides = [1, 1]} : vector<8x128xf32> to vector<8x32xf32>
    %128 = vector.extract_strided_slice %125 {offsets = [0, 64], sizes = [8, 32], strides = [1, 1]} : vector<8x128xf32> to vector<8x32xf32>
    %129 = vector.extract_strided_slice %124 {offsets = [0, 96], sizes = [8, 32], strides = [1, 1]} : vector<8x128xf32> to vector<8x32xf32>
    %130 = arith.mulf %127, %114 : vector<8x32xf32>
    %131 = arith.mulf %126, %128 : vector<8x32xf32>
    %132 = arith.addf %130, %131 : vector<8x32xf32>
    %133 = math.tanh %132 : vector<8x32xf32>
    %134 = arith.mulf %129, %133 : vector<8x32xf32>
    %135 = vector.extract_strided_slice %6 {offsets = [56, 0], sizes = [8, 128], strides = [1, 1]} : vector<64x128xf32> to vector<8x128xf32>
    %cst_23 = arith.constant dense<0.000000e+00> : vector<8x128xf32>
    %136 = tpu.matmul %134, %2, %cst_23 {dimension_numbers = #tpu.dot_dimension_numbers<[1], [0], [0], [1], [0, 0, 1, 1], [], []>} : vector<8x32xf32>, vector<32x128xf32>, vector<8x128xf32> -> vector<8x128xf32>
    %137 = arith.addf %135, %136 : vector<8x128xf32>
    %138 = arith.negf %137 : vector<8x128xf32>
    %139 = math.exp %138 : vector<8x128xf32>
    %cst_24 = arith.constant 1.000000e+00 : f32
    %140 = vector.broadcast %cst_24 : f32 to vector<8x128xf32>
    %141 = arith.addf %140, %139 : vector<8x128xf32>
    %142 = arith.divf %140, %141 : vector<8x128xf32>
    %143 = math.tanh %137 : vector<8x128xf32>
    %144 = vector.extract_strided_slice %142 {offsets = [0, 0], sizes = [8, 32], strides = [1, 1]} : vector<8x128xf32> to vector<8x32xf32>
    %145 = vector.extract_strided_slice %142 {offsets = [0, 32], sizes = [8, 32], strides = [1, 1]} : vector<8x128xf32> to vector<8x32xf32>
    %146 = vector.extract_strided_slice %143 {offsets = [0, 64], sizes = [8, 32], strides = [1, 1]} : vector<8x128xf32> to vector<8x32xf32>
    %147 = vector.extract_strided_slice %142 {offsets = [0, 96], sizes = [8, 32], strides = [1, 1]} : vector<8x128xf32> to vector<8x32xf32>
    %148 = arith.mulf %145, %132 : vector<8x32xf32>
    %149 = arith.mulf %144, %146 : vector<8x32xf32>
    %150 = arith.addf %148, %149 : vector<8x32xf32>
    %151 = math.tanh %150 : vector<8x32xf32>
    %152 = arith.mulf %147, %151 : vector<8x32xf32>
    %153 = tpu.concatenate %26, %44, %62, %80, %98, %116, %134, %152 in 0 : vector<8x32xf32>, vector<8x32xf32>, vector<8x32xf32>, vector<8x32xf32>, vector<8x32xf32>, vector<8x32xf32>, vector<8x32xf32>, vector<8x32xf32> -> vector<64x32xf32>
    %c0_25 = arith.constant 0 : index
    %c0_26 = arith.constant 0 : index
    %154 = vector.load %arg4[%c0_25, %c0_26] : memref<32x128xf32, #tpu.memory_space<vmem>>, vector<32x128xf32>
    %c0_27 = arith.constant 0 : index
    %c0_28 = arith.constant 0 : index
    %155 = vector.load %arg5[%c0_27, %c0_28] : memref<32x128xf32, #tpu.memory_space<vmem>>, vector<32x128xf32>
    %c0_29 = arith.constant 0 : index
    %c0_30 = arith.constant 0 : index
    %156 = vector.load %arg6[%c0_29, %c0_30] : memref<1x128xf32, #tpu.memory_space<vmem>>, vector<1x128xf32>
    %cst_31 = arith.constant dense<0.000000e+00> : vector<64x128xf32>
    %157 = tpu.matmul %153, %154, %cst_31 {dimension_numbers = #tpu.dot_dimension_numbers<[1], [0], [0], [1], [0, 0, 1, 1], [], []>} : vector<64x32xf32>, vector<32x128xf32>, vector<64x128xf32> -> vector<64x128xf32>
    %158 = vector.broadcast %156 : vector<1x128xf32> to vector<64x128xf32>
    %159 = arith.addf %157, %158 : vector<64x128xf32>
    %cst_32 = arith.constant 0.000000e+00 : f32
    %160 = vector.broadcast %cst_32 : f32 to vector<8x32xf32>
    %cst_33 = arith.constant 0.000000e+00 : f32
    %161 = vector.broadcast %cst_33 : f32 to vector<8x32xf32>
    %162 = vector.extract_strided_slice %159 {offsets = [0, 0], sizes = [8, 128], strides = [1, 1]} : vector<64x128xf32> to vector<8x128xf32>
    %cst_34 = arith.constant dense<0.000000e+00> : vector<8x128xf32>
    %163 = tpu.matmul %160, %155, %cst_34 {dimension_numbers = #tpu.dot_dimension_numbers<[1], [0], [0], [1], [0, 0, 1, 1], [], []>} : vector<8x32xf32>, vector<32x128xf32>, vector<8x128xf32> -> vector<8x128xf32>
    %164 = arith.addf %162, %163 : vector<8x128xf32>
    %165 = arith.negf %164 : vector<8x128xf32>
    %166 = math.exp %165 : vector<8x128xf32>
    %cst_35 = arith.constant 1.000000e+00 : f32
    %167 = vector.broadcast %cst_35 : f32 to vector<8x128xf32>
    %168 = arith.addf %167, %166 : vector<8x128xf32>
    %169 = arith.divf %167, %168 : vector<8x128xf32>
    %170 = math.tanh %164 : vector<8x128xf32>
    %171 = vector.extract_strided_slice %169 {offsets = [0, 0], sizes = [8, 32], strides = [1, 1]} : vector<8x128xf32> to vector<8x32xf32>
    %172 = vector.extract_strided_slice %169 {offsets = [0, 32], sizes = [8, 32], strides = [1, 1]} : vector<8x128xf32> to vector<8x32xf32>
    %173 = vector.extract_strided_slice %170 {offsets = [0, 64], sizes = [8, 32], strides = [1, 1]} : vector<8x128xf32> to vector<8x32xf32>
    %174 = vector.extract_strided_slice %169 {offsets = [0, 96], sizes = [8, 32], strides = [1, 1]} : vector<8x128xf32> to vector<8x32xf32>
    %175 = arith.mulf %172, %161 : vector<8x32xf32>
    %176 = arith.mulf %171, %173 : vector<8x32xf32>
    %177 = arith.addf %175, %176 : vector<8x32xf32>
    %178 = math.tanh %177 : vector<8x32xf32>
    %179 = arith.mulf %174, %178 : vector<8x32xf32>
    %180 = vector.extract_strided_slice %159 {offsets = [8, 0], sizes = [8, 128], strides = [1, 1]} : vector<64x128xf32> to vector<8x128xf32>
    %cst_36 = arith.constant dense<0.000000e+00> : vector<8x128xf32>
    %181 = tpu.matmul %179, %155, %cst_36 {dimension_numbers = #tpu.dot_dimension_numbers<[1], [0], [0], [1], [0, 0, 1, 1], [], []>} : vector<8x32xf32>, vector<32x128xf32>, vector<8x128xf32> -> vector<8x128xf32>
    %182 = arith.addf %180, %181 : vector<8x128xf32>
    %183 = arith.negf %182 : vector<8x128xf32>
    %184 = math.exp %183 : vector<8x128xf32>
    %cst_37 = arith.constant 1.000000e+00 : f32
    %185 = vector.broadcast %cst_37 : f32 to vector<8x128xf32>
    %186 = arith.addf %185, %184 : vector<8x128xf32>
    %187 = arith.divf %185, %186 : vector<8x128xf32>
    %188 = math.tanh %182 : vector<8x128xf32>
    %189 = vector.extract_strided_slice %187 {offsets = [0, 0], sizes = [8, 32], strides = [1, 1]} : vector<8x128xf32> to vector<8x32xf32>
    %190 = vector.extract_strided_slice %187 {offsets = [0, 32], sizes = [8, 32], strides = [1, 1]} : vector<8x128xf32> to vector<8x32xf32>
    %191 = vector.extract_strided_slice %188 {offsets = [0, 64], sizes = [8, 32], strides = [1, 1]} : vector<8x128xf32> to vector<8x32xf32>
    %192 = vector.extract_strided_slice %187 {offsets = [0, 96], sizes = [8, 32], strides = [1, 1]} : vector<8x128xf32> to vector<8x32xf32>
    %193 = arith.mulf %190, %177 : vector<8x32xf32>
    %194 = arith.mulf %189, %191 : vector<8x32xf32>
    %195 = arith.addf %193, %194 : vector<8x32xf32>
    %196 = math.tanh %195 : vector<8x32xf32>
    %197 = arith.mulf %192, %196 : vector<8x32xf32>
    %198 = vector.extract_strided_slice %159 {offsets = [16, 0], sizes = [8, 128], strides = [1, 1]} : vector<64x128xf32> to vector<8x128xf32>
    %cst_38 = arith.constant dense<0.000000e+00> : vector<8x128xf32>
    %199 = tpu.matmul %197, %155, %cst_38 {dimension_numbers = #tpu.dot_dimension_numbers<[1], [0], [0], [1], [0, 0, 1, 1], [], []>} : vector<8x32xf32>, vector<32x128xf32>, vector<8x128xf32> -> vector<8x128xf32>
    %200 = arith.addf %198, %199 : vector<8x128xf32>
    %201 = arith.negf %200 : vector<8x128xf32>
    %202 = math.exp %201 : vector<8x128xf32>
    %cst_39 = arith.constant 1.000000e+00 : f32
    %203 = vector.broadcast %cst_39 : f32 to vector<8x128xf32>
    %204 = arith.addf %203, %202 : vector<8x128xf32>
    %205 = arith.divf %203, %204 : vector<8x128xf32>
    %206 = math.tanh %200 : vector<8x128xf32>
    %207 = vector.extract_strided_slice %205 {offsets = [0, 0], sizes = [8, 32], strides = [1, 1]} : vector<8x128xf32> to vector<8x32xf32>
    %208 = vector.extract_strided_slice %205 {offsets = [0, 32], sizes = [8, 32], strides = [1, 1]} : vector<8x128xf32> to vector<8x32xf32>
    %209 = vector.extract_strided_slice %206 {offsets = [0, 64], sizes = [8, 32], strides = [1, 1]} : vector<8x128xf32> to vector<8x32xf32>
    %210 = vector.extract_strided_slice %205 {offsets = [0, 96], sizes = [8, 32], strides = [1, 1]} : vector<8x128xf32> to vector<8x32xf32>
    %211 = arith.mulf %208, %195 : vector<8x32xf32>
    %212 = arith.mulf %207, %209 : vector<8x32xf32>
    %213 = arith.addf %211, %212 : vector<8x32xf32>
    %214 = math.tanh %213 : vector<8x32xf32>
    %215 = arith.mulf %210, %214 : vector<8x32xf32>
    %216 = vector.extract_strided_slice %159 {offsets = [24, 0], sizes = [8, 128], strides = [1, 1]} : vector<64x128xf32> to vector<8x128xf32>
    %cst_40 = arith.constant dense<0.000000e+00> : vector<8x128xf32>
    %217 = tpu.matmul %215, %155, %cst_40 {dimension_numbers = #tpu.dot_dimension_numbers<[1], [0], [0], [1], [0, 0, 1, 1], [], []>} : vector<8x32xf32>, vector<32x128xf32>, vector<8x128xf32> -> vector<8x128xf32>
    %218 = arith.addf %216, %217 : vector<8x128xf32>
    %219 = arith.negf %218 : vector<8x128xf32>
    %220 = math.exp %219 : vector<8x128xf32>
    %cst_41 = arith.constant 1.000000e+00 : f32
    %221 = vector.broadcast %cst_41 : f32 to vector<8x128xf32>
    %222 = arith.addf %221, %220 : vector<8x128xf32>
    %223 = arith.divf %221, %222 : vector<8x128xf32>
    %224 = math.tanh %218 : vector<8x128xf32>
    %225 = vector.extract_strided_slice %223 {offsets = [0, 0], sizes = [8, 32], strides = [1, 1]} : vector<8x128xf32> to vector<8x32xf32>
    %226 = vector.extract_strided_slice %223 {offsets = [0, 32], sizes = [8, 32], strides = [1, 1]} : vector<8x128xf32> to vector<8x32xf32>
    %227 = vector.extract_strided_slice %224 {offsets = [0, 64], sizes = [8, 32], strides = [1, 1]} : vector<8x128xf32> to vector<8x32xf32>
    %228 = vector.extract_strided_slice %223 {offsets = [0, 96], sizes = [8, 32], strides = [1, 1]} : vector<8x128xf32> to vector<8x32xf32>
    %229 = arith.mulf %226, %213 : vector<8x32xf32>
    %230 = arith.mulf %225, %227 : vector<8x32xf32>
    %231 = arith.addf %229, %230 : vector<8x32xf32>
    %232 = math.tanh %231 : vector<8x32xf32>
    %233 = arith.mulf %228, %232 : vector<8x32xf32>
    %234 = vector.extract_strided_slice %159 {offsets = [32, 0], sizes = [8, 128], strides = [1, 1]} : vector<64x128xf32> to vector<8x128xf32>
    %cst_42 = arith.constant dense<0.000000e+00> : vector<8x128xf32>
    %235 = tpu.matmul %233, %155, %cst_42 {dimension_numbers = #tpu.dot_dimension_numbers<[1], [0], [0], [1], [0, 0, 1, 1], [], []>} : vector<8x32xf32>, vector<32x128xf32>, vector<8x128xf32> -> vector<8x128xf32>
    %236 = arith.addf %234, %235 : vector<8x128xf32>
    %237 = arith.negf %236 : vector<8x128xf32>
    %238 = math.exp %237 : vector<8x128xf32>
    %cst_43 = arith.constant 1.000000e+00 : f32
    %239 = vector.broadcast %cst_43 : f32 to vector<8x128xf32>
    %240 = arith.addf %239, %238 : vector<8x128xf32>
    %241 = arith.divf %239, %240 : vector<8x128xf32>
    %242 = math.tanh %236 : vector<8x128xf32>
    %243 = vector.extract_strided_slice %241 {offsets = [0, 0], sizes = [8, 32], strides = [1, 1]} : vector<8x128xf32> to vector<8x32xf32>
    %244 = vector.extract_strided_slice %241 {offsets = [0, 32], sizes = [8, 32], strides = [1, 1]} : vector<8x128xf32> to vector<8x32xf32>
    %245 = vector.extract_strided_slice %242 {offsets = [0, 64], sizes = [8, 32], strides = [1, 1]} : vector<8x128xf32> to vector<8x32xf32>
    %246 = vector.extract_strided_slice %241 {offsets = [0, 96], sizes = [8, 32], strides = [1, 1]} : vector<8x128xf32> to vector<8x32xf32>
    %247 = arith.mulf %244, %231 : vector<8x32xf32>
    %248 = arith.mulf %243, %245 : vector<8x32xf32>
    %249 = arith.addf %247, %248 : vector<8x32xf32>
    %250 = math.tanh %249 : vector<8x32xf32>
    %251 = arith.mulf %246, %250 : vector<8x32xf32>
    %252 = vector.extract_strided_slice %159 {offsets = [40, 0], sizes = [8, 128], strides = [1, 1]} : vector<64x128xf32> to vector<8x128xf32>
    %cst_44 = arith.constant dense<0.000000e+00> : vector<8x128xf32>
    %253 = tpu.matmul %251, %155, %cst_44 {dimension_numbers = #tpu.dot_dimension_numbers<[1], [0], [0], [1], [0, 0, 1, 1], [], []>} : vector<8x32xf32>, vector<32x128xf32>, vector<8x128xf32> -> vector<8x128xf32>
    %254 = arith.addf %252, %253 : vector<8x128xf32>
    %255 = arith.negf %254 : vector<8x128xf32>
    %256 = math.exp %255 : vector<8x128xf32>
    %cst_45 = arith.constant 1.000000e+00 : f32
    %257 = vector.broadcast %cst_45 : f32 to vector<8x128xf32>
    %258 = arith.addf %257, %256 : vector<8x128xf32>
    %259 = arith.divf %257, %258 : vector<8x128xf32>
    %260 = math.tanh %254 : vector<8x128xf32>
    %261 = vector.extract_strided_slice %259 {offsets = [0, 0], sizes = [8, 32], strides = [1, 1]} : vector<8x128xf32> to vector<8x32xf32>
    %262 = vector.extract_strided_slice %259 {offsets = [0, 32], sizes = [8, 32], strides = [1, 1]} : vector<8x128xf32> to vector<8x32xf32>
    %263 = vector.extract_strided_slice %260 {offsets = [0, 64], sizes = [8, 32], strides = [1, 1]} : vector<8x128xf32> to vector<8x32xf32>
    %264 = vector.extract_strided_slice %259 {offsets = [0, 96], sizes = [8, 32], strides = [1, 1]} : vector<8x128xf32> to vector<8x32xf32>
    %265 = arith.mulf %262, %249 : vector<8x32xf32>
    %266 = arith.mulf %261, %263 : vector<8x32xf32>
    %267 = arith.addf %265, %266 : vector<8x32xf32>
    %268 = math.tanh %267 : vector<8x32xf32>
    %269 = arith.mulf %264, %268 : vector<8x32xf32>
    %270 = vector.extract_strided_slice %159 {offsets = [48, 0], sizes = [8, 128], strides = [1, 1]} : vector<64x128xf32> to vector<8x128xf32>
    %cst_46 = arith.constant dense<0.000000e+00> : vector<8x128xf32>
    %271 = tpu.matmul %269, %155, %cst_46 {dimension_numbers = #tpu.dot_dimension_numbers<[1], [0], [0], [1], [0, 0, 1, 1], [], []>} : vector<8x32xf32>, vector<32x128xf32>, vector<8x128xf32> -> vector<8x128xf32>
    %272 = arith.addf %270, %271 : vector<8x128xf32>
    %273 = arith.negf %272 : vector<8x128xf32>
    %274 = math.exp %273 : vector<8x128xf32>
    %cst_47 = arith.constant 1.000000e+00 : f32
    %275 = vector.broadcast %cst_47 : f32 to vector<8x128xf32>
    %276 = arith.addf %275, %274 : vector<8x128xf32>
    %277 = arith.divf %275, %276 : vector<8x128xf32>
    %278 = math.tanh %272 : vector<8x128xf32>
    %279 = vector.extract_strided_slice %277 {offsets = [0, 0], sizes = [8, 32], strides = [1, 1]} : vector<8x128xf32> to vector<8x32xf32>
    %280 = vector.extract_strided_slice %277 {offsets = [0, 32], sizes = [8, 32], strides = [1, 1]} : vector<8x128xf32> to vector<8x32xf32>
    %281 = vector.extract_strided_slice %278 {offsets = [0, 64], sizes = [8, 32], strides = [1, 1]} : vector<8x128xf32> to vector<8x32xf32>
    %282 = vector.extract_strided_slice %277 {offsets = [0, 96], sizes = [8, 32], strides = [1, 1]} : vector<8x128xf32> to vector<8x32xf32>
    %283 = arith.mulf %280, %267 : vector<8x32xf32>
    %284 = arith.mulf %279, %281 : vector<8x32xf32>
    %285 = arith.addf %283, %284 : vector<8x32xf32>
    %286 = math.tanh %285 : vector<8x32xf32>
    %287 = arith.mulf %282, %286 : vector<8x32xf32>
    %288 = vector.extract_strided_slice %159 {offsets = [56, 0], sizes = [8, 128], strides = [1, 1]} : vector<64x128xf32> to vector<8x128xf32>
    %cst_48 = arith.constant dense<0.000000e+00> : vector<8x128xf32>
    %289 = tpu.matmul %287, %155, %cst_48 {dimension_numbers = #tpu.dot_dimension_numbers<[1], [0], [0], [1], [0, 0, 1, 1], [], []>} : vector<8x32xf32>, vector<32x128xf32>, vector<8x128xf32> -> vector<8x128xf32>
    %290 = arith.addf %288, %289 : vector<8x128xf32>
    %291 = arith.negf %290 : vector<8x128xf32>
    %292 = math.exp %291 : vector<8x128xf32>
    %cst_49 = arith.constant 1.000000e+00 : f32
    %293 = vector.broadcast %cst_49 : f32 to vector<8x128xf32>
    %294 = arith.addf %293, %292 : vector<8x128xf32>
    %295 = arith.divf %293, %294 : vector<8x128xf32>
    %296 = math.tanh %290 : vector<8x128xf32>
    %297 = vector.extract_strided_slice %295 {offsets = [0, 0], sizes = [8, 32], strides = [1, 1]} : vector<8x128xf32> to vector<8x32xf32>
    %298 = vector.extract_strided_slice %295 {offsets = [0, 32], sizes = [8, 32], strides = [1, 1]} : vector<8x128xf32> to vector<8x32xf32>
    %299 = vector.extract_strided_slice %296 {offsets = [0, 64], sizes = [8, 32], strides = [1, 1]} : vector<8x128xf32> to vector<8x32xf32>
    %300 = vector.extract_strided_slice %295 {offsets = [0, 96], sizes = [8, 32], strides = [1, 1]} : vector<8x128xf32> to vector<8x32xf32>
    %301 = arith.mulf %298, %285 : vector<8x32xf32>
    %302 = arith.mulf %297, %299 : vector<8x32xf32>
    %303 = arith.addf %301, %302 : vector<8x32xf32>
    %304 = math.tanh %303 : vector<8x32xf32>
    %305 = arith.mulf %300, %304 : vector<8x32xf32>
    %c0_50 = arith.constant 0 : index
    %c0_51 = arith.constant 0 : index
    %306 = vector.load %arg7[%c0_50, %c0_51] : memref<32x32xf32, #tpu.memory_space<vmem>>, vector<32x32xf32>
    %c0_52 = arith.constant 0 : index
    %c0_53 = arith.constant 0 : index
    %307 = vector.load %arg8[%c0_52, %c0_53] : memref<1x32xf32, #tpu.memory_space<vmem>>, vector<1x32xf32>
    %c0_54 = arith.constant 0 : index
    %c0_55 = arith.constant 0 : index
    %308 = vector.load %arg9[%c0_54, %c0_55] : memref<32x128xf32, #tpu.memory_space<vmem>>, vector<32x128xf32>
    %c0_56 = arith.constant 0 : index
    %c0_57 = arith.constant 0 : index
    %309 = vector.load %arg10[%c0_56, %c0_57] : memref<1x128xf32, #tpu.memory_space<vmem>>, vector<1x128xf32>
    %cst_58 = arith.constant dense<0.000000e+00> : vector<8x32xf32>
    %310 = tpu.matmul %305, %306, %cst_58 {dimension_numbers = #tpu.dot_dimension_numbers<[1], [0], [0], [1], [0, 0, 1, 1], [], []>} : vector<8x32xf32>, vector<32x32xf32>, vector<8x32xf32> -> vector<8x32xf32>
    %311 = vector.broadcast %307 : vector<1x32xf32> to vector<8x32xf32>
    %312 = arith.addf %310, %311 : vector<8x32xf32>
    %cst_59 = arith.constant 0.000000e+00 : f32
    %313 = vector.broadcast %cst_59 : f32 to vector<8x32xf32>
    %314 = arith.maximumf %312, %313 : vector<8x32xf32>
    %cst_60 = arith.constant dense<0.000000e+00> : vector<8x128xf32>
    %315 = tpu.matmul %314, %308, %cst_60 {dimension_numbers = #tpu.dot_dimension_numbers<[1], [0], [0], [1], [0, 0, 1, 1], [], []>} : vector<8x32xf32>, vector<32x128xf32>, vector<8x128xf32> -> vector<8x128xf32>
    %316 = vector.broadcast %309 : vector<1x128xf32> to vector<8x128xf32>
    %317 = arith.addf %315, %316 : vector<8x128xf32>
    %c0_61 = arith.constant 0 : index
    %c0_62 = arith.constant 0 : index
    %318 = vector.load %arg11[%c0_61, %c0_62] : memref<8x128xf32, #tpu.memory_space<vmem>>, vector<8x128xf32>
    tpu.vector_store %arg11[%c0_61, %c0_62], %317 {strides = array<i32>} : memref<8x128xf32, #tpu.memory_space<vmem>>, vector<8x128xf32>,
    return
  }
}

</mosaic_0001>

<llo_original>
// kernel: tpu_custom_call.1
$region0: #{tpu_custom_call.1}
  #allocation0 [shape = 'u32[]', space=smem, size = 0x4, offset = 0x4, fixed_abs, tag = 'smem constant byte address 0x4 - core index']
  #allocation1 [shape = 'u32[144,128]{1,0:T(1,128)}', space=vmem, size = 0x12000, scoped, tag = 'internal scratch']
  %s0 = inlined_call_operand.vmem [shape: f32[64,4], index: 0, kind: input, shape index: {}]
  %s1 = inlined_call_operand.hbm [shape: f32[4,128], index: 1, kind: input, shape index: {}]
  %s2 = inlined_call_operand.vmem [shape: f32[32,128], index: 2, kind: input, shape index: {}]
  %s3 = inlined_call_operand.vmem [shape: f32[1,128], index: 3, kind: input, shape index: {}]
  %s4 = inlined_call_operand.vmem [shape: f32[32,128], index: 4, kind: input, shape index: {}]
  %s5 = inlined_call_operand.hbm [shape: f32[32,128], index: 5, kind: input, shape index: {}]
  %s6 = inlined_call_operand.vmem [shape: f32[1,128], index: 6, kind: input, shape index: {}]
  %s7 = inlined_call_operand.hbm [shape: f32[32,32], index: 7, kind: input, shape index: {}]
  %s8 = inlined_call_operand.hbm [shape: f32[1,32], index: 8, kind: input, shape index: {}]
  %s9 = inlined_call_operand.vmem [shape: f32[32,128], index: 9, kind: input, shape index: {}]
  %s10 = inlined_call_operand.vmem [shape: f32[1,128], index: 10, kind: input, shape index: {}]
  %s11 = inlined_call_operand.hbm [shape: f32[8,128], index: 11, kind: output, shape index: {}]
  %s12 = sld [smem:[#allocation0]]
  $region70: #{tpu_custom_call.1} parent=0
    _
  %s14 = ssub.s32 1, %s12
  %s15 = scalar_select 0, %s14, %s12
  $region1: #{tpu_custom_call.1} parent=0
    #allocation2 [shape = 'u8[2048]{0}', space=vmem, size = 0x800, scoped, tag = 'input window, operand 1, single buffered']
    #allocation3 [shape = 's32[1]{0}', space=sflag, size = 0x4, scoped, tag = 'scoped memory for tpu_custom_call.1']
    #allocation4 [shape = 's32[1]{0}', space=sflag, size = 0x4, scoped, tag = 'scoped memory for tpu_custom_call.1']
    #allocation5 [shape = 'u8[16384]{0}', space=vmem, size = 0x4000, scoped, tag = 'input window, operand 5, single buffered']
    #allocation6 [shape = 's32[1]{0}', space=sflag, size = 0x4, scoped, tag = 'scoped memory for tpu_custom_call.1']
    #allocation7 [shape = 'u8[16384]{0}', space=vmem, size = 0x4000, scoped, tag = 'input window, operand 7, single buffered']
    #allocation8 [shape = 'u8[512]{0}', space=vmem, size = 0x400, scoped, tag = 'input window, operand 8, single buffered']
    #allocation9 [shape = 's32[1]{0}', space=sflag, size = 0x4, scoped, tag = 'scoped memory for tpu_custom_call.1']
    #allocation10 [shape = 'u8[4096]{0}', space=vmem, size = 0x1000, scoped, tag = 'output window, operand 0, single buffered']
    %16 = vsyncpa [#allocation3], 0
    %17 = vsyncpa [#allocation6], 0
    %18 = vsyncpa [#allocation9], 0
    %19 = vsyncpa [#allocation4], 0
    // Predicated region
    $region2: #{tpu_custom_call.1} parent=1 // pred_check
      _
    $region3: #{tpu_custom_call.1} parent=1 // pred_check_branch
      %21 = sbr.rel (0) target = $region5
    $region4: #{tpu_custom_call.1} parent=1 // pred_region
      _
    $region5: #{tpu_custom_call.1} parent=1 // pred_fallthru
      _
    // Predicated region
    $region6: #{tpu_custom_call.1} parent=1 // pred_check
      _
    $region7: #{tpu_custom_call.1} parent=1 // pred_check_branch
      %23 = sbr.rel (0) target = $region9
    $region8: #{tpu_custom_call.1} parent=1 // pred_region
      %s25 = ssub.s32 64, 64
      %26 = vsyncadd [#allocation3], %s25
      %s28 = sshll.u32 [#allocation2], 4
      %s29 = int_to_ptr.vmem [resolvable:$true] %s28
      %31 = dma.hbm_to_vmem [thread:$0]  %s1, 64, %s29, [#allocation3]
    $region9: #{tpu_custom_call.1} parent=1 // pred_fallthru
      _
    // Predicated region
    $region10: #{tpu_custom_call.1} parent=1 // pred_check
      _
    $region11: #{tpu_custom_call.1} parent=1 // pred_check_branch
      %33 = sbr.rel (0) target = $region13
    $region12: #{tpu_custom_call.1} parent=1 // pred_region
      _
    $region13: #{tpu_custom_call.1} parent=1 // pred_fallthru
      _
    // Predicated region
    $region14: #{tpu_custom_call.1} parent=1 // pred_check
      _
    $region15: #{tpu_custom_call.1} parent=1 // pred_check_branch
      %35 = sbr.rel (0) target = $region17
    $region16: #{tpu_custom_call.1} parent=1 // pred_region
      _
    $region17: #{tpu_custom_call.1} parent=1 // pred_fallthru
      _
    // Predicated region
    $region18: #{tpu_custom_call.1} parent=1 // pred_check
      _
    $region19: #{tpu_custom_call.1} parent=1 // pred_check_branch
      %37 = sbr.rel (0) target = $region21
    $region20: #{tpu_custom_call.1} parent=1 // pred_region
      _
    $region21: #{tpu_custom_call.1} parent=1 // pred_fallthru
      _
    // Predicated region
    $region22: #{tpu_custom_call.1} parent=1 // pred_check
      _
    $region23: #{tpu_custom_call.1} parent=1 // pred_check_branch
      %39 = sbr.rel (0) target = $region25
    $region24: #{tpu_custom_call.1} parent=1 // pred_region
      %s41 = ssub.s32 512, 512
      %42 = vsyncadd [#allocation6], %s41
      %s43 = sshll.u32 [#allocation5], 4
      %s44 = int_to_ptr.vmem [resolvable:$true] %s43
      %49 = dma.hbm_to_vmem [thread:$0]  %s5, 512, %s44, [#allocation6], 128, 128, 8
    $region25: #{tpu_custom_call.1} parent=1 // pred_fallthru
      _
    // Predicated region
    $region26: #{tpu_custom_call.1} parent=1 // pred_check
      _
    $region27: #{tpu_custom_call.1} parent=1 // pred_check_branch
      %51 = sbr.rel (0) target = $region29
    $region28: #{tpu_custom_call.1} parent=1 // pred_region
      _
    $region29: #{tpu_custom_call.1} parent=1 // pred_fallthru
      _
    // Predicated region
    $region30: #{tpu_custom_call.1} parent=1 // pred_check
      _
    $region31: #{tpu_custom_call.1} parent=1 // pred_check_branch
      %53 = sbr.rel (0) target = $region33
    $region32: #{tpu_custom_call.1} parent=1 // pred_region
      %s55 = ssub.s32 512, 512
      %56 = vsyncadd [#allocation6], %s55
      %s57 = sshll.u32 [#allocation7], 4
      %s58 = int_to_ptr.vmem [resolvable:$true] %s57
      %63 = dma.hbm_to_vmem [thread:$0]  %s7, 512, %s58, [#allocation6], 128, 128, 8
    $region33: #{tpu_custom_call.1} parent=1 // pred_fallthru
      _
    // Predicated region
    $region34: #{tpu_custom_call.1} parent=1 // pred_check
      _
    $region35: #{tpu_custom_call.1} parent=1 // pred_check_branch
      %65 = sbr.rel (0) target = $region37
    $region36: #{tpu_custom_call.1} parent=1 // pred_region
      %s67 = ssub.s32 16, 16
      %68 = vsyncadd [#allocation9], %s67
      %s70 = sshll.u32 [#allocation8], 4
      %s71 = int_to_ptr.vmem [resolvable:$true] %s70
      %73 = dma.hbm_to_vmem [thread:$0]  %s8, 16, %s71, [#allocation9]
    $region37: #{tpu_custom_call.1} parent=1 // pred_fallthru
      _
    // Predicated region
    $region38: #{tpu_custom_call.1} parent=1 // pred_check
      _
    $region39: #{tpu_custom_call.1} parent=1 // pred_check_branch
      %75 = sbr.rel (0) target = $region41
    $region40: #{tpu_custom_call.1} parent=1 // pred_region
      _
    $region41: #{tpu_custom_call.1} parent=1 // pred_fallthru
      _
    // Predicated region
    $region42: #{tpu_custom_call.1} parent=1 // pred_check
      _
    $region43: #{tpu_custom_call.1} parent=1 // pred_check_branch
      %77 = sbr.rel (0) target = $region45
    $region44: #{tpu_custom_call.1} parent=1 // pred_region
      _
    $region45: #{tpu_custom_call.1} parent=1 // pred_fallthru
      _
    // Predicated region
    $region46: #{tpu_custom_call.1} parent=1 // pred_check
      _
    $region47: #{tpu_custom_call.1} parent=1 // pred_check_branch
      %79 = sbr.rel (0) target = $region49
    $region48: #{tpu_custom_call.1} parent=1 // pred_region
      %80 = dma.done [#allocation3], 64
    $region49: #{tpu_custom_call.1} parent=1 // pred_fallthru
      _
    // Predicated region
    $region50: #{tpu_custom_call.1} parent=1 // pred_check
      _
    $region51: #{tpu_custom_call.1} parent=1 // pred_check_branch
      %82 = sbr.rel (0) target = $region53
    $region52: #{tpu_custom_call.1} parent=1 // pred_region
      %83 = dma.done [#allocation6], 512
    $region53: #{tpu_custom_call.1} parent=1 // pred_fallthru
      _
    // Predicated region
    $region54: #{tpu_custom_call.1} parent=1 // pred_check
      _
    $region55: #{tpu_custom_call.1} parent=1 // pred_check_branch
      %85 = sbr.rel (0) target = $region57
    $region56: #{tpu_custom_call.1} parent=1 // pred_region
      %86 = dma.done [#allocation6], 512
    $region57: #{tpu_custom_call.1} parent=1 // pred_fallthru
      _
    // Predicated region
    $region58: #{tpu_custom_call.1} parent=1 // pred_check
      _
    $region59: #{tpu_custom_call.1} parent=1 // pred_check_branch
      %88 = sbr.rel (0) target = $region61
    $region60: #{tpu_custom_call.1} parent=1 // pred_region
      %89 = dma.done [#allocation9], 16
    $region61: #{tpu_custom_call.1} parent=1 // pred_fallthru
      _
    %v90 = vld [vmem:[%s0] sm:$0xff]
    %v91 = vld [vmem:[%s0 + $0x8] sm:$0xff]
    %v92 = vld [vmem:[%s0 + $0x10] sm:$0xff]
    %v93 = vld [vmem:[%s0 + $0x18] sm:$0xff]
    %v94 = vld [vmem:[%s0 + $0x20] sm:$0xff]
    %v95 = vld [vmem:[%s0 + $0x28] sm:$0xff]
    %v96 = vld [vmem:[%s0 + $0x30] sm:$0xff]
    %v97 = vld [vmem:[%s0 + $0x38] sm:$0xff]
    %v98 = vld [vmem:[#allocation2] sm:$0xf]
    %v99 = vld [vmem:[%s2] sm:$0xff]
    %v100 = vld [vmem:[%s2 + $0x8] sm:$0xff]
    %v101 = vld [vmem:[%s2 + $0x10] sm:$0xff]
    %v102 = vld [vmem:[%s2 + $0x18] sm:$0xff]
    %v103 = vld [vmem:[%s3] sm:$0x1]
    %v105 = vlaneseq
    %v106 = vshrl.u32 %v105, 7
    %v107 = vsub.s32 0, %v106
    %v108 = vrot.slane %v103, %v107
    %vm110 = vcmask 31744
    %v112 = vsel %vm110, %v90, 0
    %v115 = vsel %vm110, %v91, 0
    %v118 = vsel %vm110, %v92, 0
    %v121 = vsel %vm110, %v93, 0
    %v124 = vsel %vm110, %v94, 0
    %v127 = vsel %vm110, %v95, 0
    %v130 = vsel %vm110, %v96, 0
    %v133 = vsel %vm110, %v97, 0
    %vm135 = vcmask 1043456
    %v137 = vsel %vm135, %v98, 0
    %139 = vmatprep.subr.mxu0 0.0
    %140 = vmatpush1.msra.mxu0 %v137
    %141 = vmatprep.subr.mxu0 0.0
    %142 = vmatpush1.msra.mxu0 0.0
    %143 = vmatprep.subr.mxu0 0.0
    %144 = vmatpush1.msra.mxu0 0.0
    %145 = vmatprep.subr.mxu0 0.0
    %146 = vmatpush1.msra.mxu0 0.0
    %147 = vmatprep.subr.mxu0 0.0
    %148 = vmatpush1.msra.mxu0 0.0
    %149 = vmatprep.subr.mxu0 0.0
    %150 = vmatpush1.msra.mxu0 0.0
    %151 = vmatprep.subr.mxu0 0.0
    %152 = vmatpush1.msra.mxu0 0.0
    %153 = vmatprep.subr.mxu0 0.0
    %154 = vmatpush1.msra.mxu0 0.0
    %155 = vmatprep.subr.mxu0 0.0
    %156 = vmatpush1.msra.mxu0 0.0
    %157 = vmatprep.subr.mxu0 0.0
    %158 = vmatpush1.msra.mxu0 0.0
    %159 = vmatprep.subr.mxu0 0.0
    %160 = vmatpush1.msra.mxu0 0.0
    %161 = vmatprep.subr.mxu0 0.0
    %162 = vmatpush1.msra.mxu0 0.0
    %163 = vmatprep.subr.mxu0 0.0
    %164 = vmatpush1.msra.mxu0 0.0
    %165 = vmatprep.subr.mxu0 0.0
    %166 = vmatpush1.msra.mxu0 0.0
    %167 = vmatprep.subr.mxu0 0.0
    %168 = vmatpush1.msra.mxu0 0.0
    %169 = vmatprep.subr.mxu0 0.0
    %170 = vmatpush1.msra.mxu0 0.0
    %171 = vmatprep.subr.mxu0 0.0
    %172 = vmatpush1.msra.mxu0 0.0
    %173 = vmatprep.subr.mxu0 0.0
    %174 = vmatpush1.msra.mxu0 0.0
    %175 = vmatprep.subr.mxu0 0.0
    %176 = vmatpush1.msra.mxu0 0.0
    %177 = vmatprep.subr.mxu0 0.0
    %178 = vmatpush1.msra.mxu0 0.0
    %179 = vmatprep.subr.mxu0 0.0
    %180 = vmatpush1.msra.mxu0 0.0
    %181 = vmatprep.subr.mxu0 0.0
    %182 = vmatpush1.msra.mxu0 0.0
    %183 = vmatprep.subr.mxu0 0.0
    %184 = vmatpush1.msra.mxu0 0.0
    %185 = vmatprep.subr.mxu0 0.0
    %186 = vmatpush1.msra.mxu0 0.0
    %187 = vmatprep.subr.mxu0 0.0
    %188 = vmatpush1.msra.mxu0 0.0
    %189 = vmatprep.subr.mxu0 0.0
    %190 = vmatpush1.msra.mxu0 0.0
    %191 = vmatprep.subr.mxu0 0.0
    %192 = vmatpush1.msra.mxu0 0.0
    %193 = vmatprep.subr.mxu0 0.0
    %194 = vmatpush1.msra.mxu0 0.0
    %195 = vmatprep.subr.mxu0 0.0
    %196 = vmatpush1.msra.mxu0 0.0
    %197 = vmatprep.subr.mxu0 0.0
    %198 = vmatpush1.msra.mxu0 0.0
    %199 = vmatprep.subr.mxu0 0.0
    %200 = vmatpush1.msra.mxu0 0.0
    %201 = vmatprep.subr.mxu0 0.0
    %202 = vmatpush1.msra.mxu0 0.0
    %203 = vmatprep.mubr.f32.mxu0 0.0
    %204 = vmatmul.mubr.f32.gmra.mrb[0].mxu0 %v112
    %v205 = vpop.f32.mrb[0].mxu0
    %v206 = vadd.f32 %v108, %v205
    %v207 = vpop.f32.mrb[0].mxu0
    %208 = vmatprep.mubr.f32.mxu0 0.0
    %209 = vmatmul.mubr.f32.gmra.mrb[0].mxu0 %v115
    %v210 = vpop.f32.mrb[0].mxu0
    %v211 = vadd.f32 %v108, %v210
    %v212 = vpop.f32.mrb[0].mxu0
    %213 = vmatprep.mubr.f32.mxu0 0.0
    %214 = vmatmul.mubr.f32.gmra.mrb[0].mxu0 %v118
    %v215 = vpop.f32.mrb[0].mxu0
    %v216 = vadd.f32 %v108, %v215
    %v217 = vpop.f32.mrb[0].mxu0
    %218 = vmatprep.mubr.f32.mxu0 0.0
    %219 = vmatmul.mubr.f32.gmra.mrb[0].mxu0 %v121
    %v220 = vpop.f32.mrb[0].mxu0
    %v221 = vadd.f32 %v108, %v220
    %v222 = vpop.f32.mrb[0].mxu0
    %223 = vmatprep.mubr.f32.mxu0 0.0
    %224 = vmatmul.mubr.f32.gmra.mrb[0].mxu0 %v124
    %v225 = vpop.f32.mrb[0].mxu0
    %v226 = vadd.f32 %v108, %v225
    %v227 = vpop.f32.mrb[0].mxu0
    %228 = vmatprep.mubr.f32.mxu0 0.0
    %229 = vmatmul.mubr.f32.gmra.mrb[0].mxu0 %v127
    %v230 = vpop.f32.mrb[0].mxu0
    %v231 = vadd.f32 %v108, %v230
    %v232 = vpop.f32.mrb[0].mxu0
    %233 = vmatprep.mubr.f32.mxu0 0.0
    %234 = vmatmul.mubr.f32.gmra.mrb[0].mxu0 %v130
    %v235 = vpop.f32.mrb[0].mxu0
    %v236 = vadd.f32 %v108, %v235
    %v237 = vpop.f32.mrb[0].mxu0
    %238 = vmatprep.mubr.f32.mxu0 0.0
    %239 = vmatmul.mubr.f32.gmra.mrb[0].mxu0 %v133
    %v240 = vpop.f32.mrb[0].mxu0
    %v241 = vadd.f32 %v108, %v240
    %v242 = vpop.f32.mrb[0].mxu0
    %243 = vdwg.mxu0
    %vm244 = vcmask 261120
    %v246 = vsel %vm244, 0.0, 0
    %248 = vmatprep.subr.mxu0 0.0
    %249 = vmatpush1.msra.mxu0 %v99
    %250 = vmatprep.subr.mxu0 0.0
    %251 = vmatpush1.msra.mxu0 %v100
    %252 = vmatprep.subr.mxu0 0.0
    %253 = vmatpush1.msra.mxu0 %v101
    %254 = vmatprep.subr.mxu0 0.0
    %255 = vmatpush1.msra.mxu0 %v102
    %256 = vmatprep.subr.mxu0 0.0
    %257 = vmatpush1.msra.mxu0 0.0
    %258 = vmatprep.subr.mxu0 0.0
    %259 = vmatpush1.msra.mxu0 0.0
    %260 = vmatprep.subr.mxu0 0.0
    %261 = vmatpush1.msra.mxu0 0.0
    %262 = vmatprep.subr.mxu0 0.0
    %263 = vmatpush1.msra.mxu0 0.0
    %264 = vmatprep.subr.mxu0 0.0
    %265 = vmatpush1.msra.mxu0 0.0
    %266 = vmatprep.subr.mxu0 0.0
    %267 = vmatpush1.msra.mxu0 0.0
    %268 = vmatprep.subr.mxu0 0.0
    %269 = vmatpush1.msra.mxu0 0.0
    %270 = vmatprep.subr.mxu0 0.0
    %271 = vmatpush1.msra.mxu0 0.0
    %272 = vmatprep.subr.mxu0 0.0
    %273 = vmatpush1.msra.mxu0 0.0
    %274 = vmatprep.subr.mxu0 0.0
    %275 = vmatpush1.msra.mxu0 0.0
    %276 = vmatprep.subr.mxu0 0.0
    %277 = vmatpush1.msra.mxu0 0.0
    %278 = vmatprep.subr.mxu0 0.0
    %279 = vmatpush1.msra.mxu0 0.0
    %280 = vmatprep.subr.mxu0 0.0
    %281 = vmatpush1.msra.mxu0 0.0
    %282 = vmatprep.subr.mxu0 0.0
    %283 = vmatpush1.msra.mxu0 0.0
    %284 = vmatprep.subr.mxu0 0.0
    %285 = vmatpush1.msra.mxu0 0.0
    %286 = vmatprep.subr.mxu0 0.0
    %287 = vmatpush1.msra.mxu0 0.0
    %288 = vmatprep.subr.mxu0 0.0
    %289 = vmatpush1.msra.mxu0 0.0
    %290 = vmatprep.subr.mxu0 0.0
    %291 = vmatpush1.msra.mxu0 0.0
    %292 = vmatprep.subr.mxu0 0.0
    %293 = vmatpush1.msra.mxu0 0.0
    %294 = vmatprep.subr.mxu0 0.0
    %295 = vmatpush1.msra.mxu0 0.0
    %296 = vmatprep.subr.mxu0 0.0
    %297 = vmatpush1.msra.mxu0 0.0
    %298 = vmatprep.subr.mxu0 0.0
    %299 = vmatpush1.msra.mxu0 0.0
    %300 = vmatprep.subr.mxu0 0.0
    %301 = vmatpush1.msra.mxu0 0.0
    %302 = vmatprep.subr.mxu0 0.0
    %303 = vmatpush1.msra.mxu0 0.0
    %304 = vmatprep.subr.mxu0 0.0
    %305 = vmatpush1.msra.mxu0 0.0
    %306 = vmatprep.subr.mxu0 0.0
    %307 = vmatpush1.msra.mxu0 0.0
    %308 = vmatprep.subr.mxu0 0.0
    %309 = vmatpush1.msra.mxu0 0.0
    %310 = vmatprep.subr.mxu0 0.0
    %311 = vmatpush1.msra.mxu0 0.0
    %312 = vmatprep.mubr.f32.mxu0 0.0
    %313 = vmatmul.mubr.f32.gmra.mrb[0].mxu0 %v246
    %v314 = vpop.f32.mrb[0].mxu0
    %v315 = vadd.f32 0.0, %v314
    %v316 = vpop.f32.mrb[0].mxu0
    %317 = vdwg.mxu0
    %v318 = vadd.f32 %v206, %v315
    %v319 = vxor.u32 %v318, 2147483648
    %v320 = vmul.f32 %v319, 1.442695
    %v321 = vpow.pop %v320
    %v322 = vadd.f32 %v321, 1.0
    %v323 = vrcp.pop %v322
    %v324 = vmul.f32 1.0, %v323
    %v325 = vtanh.pop %v318
    %v326 = vmul.f32 %v324, 0.0
    %328 = vrot.lane.b32.xlu0 %v325, 64
    %v329 = vpop.permute.xlu0 %328
    %v331 = vmul.f32 %v324, %v329
    %333 = vrot.lane.b32.xlu0 %v331, 32
    %v334 = vpop.permute.xlu0 %333
    %v336 = vadd.f32 %v326, %v334
    %v337 = vtanh.pop %v336
    %339 = vrot.lane.b32.xlu0 %v337, 64
    %v340 = vpop.permute.xlu0 %339
    %v342 = vmul.f32 %v324, %v340
    %344 = vrot.lane.b32.xlu0 %v342, 32
    %v345 = vpop.permute.xlu0 %344
    %v346 = vsel %vm244, %v345, 0
    %348 = vmatprep.subr.mxu0 0.0
    %349 = vmatpush1.msra.mxu0 %v99
    %350 = vmatprep.subr.mxu0 0.0
    %351 = vmatpush1.msra.mxu0 %v100
    %352 = vmatprep.subr.mxu0 0.0
    %353 = vmatpush1.msra.mxu0 %v101
    %354 = vmatprep.subr.mxu0 0.0
    %355 = vmatpush1.msra.mxu0 %v102
    %356 = vmatprep.subr.mxu0 0.0
    %357 = vmatpush1.msra.mxu0 0.0
    %358 = vmatprep.subr.mxu0 0.0
    %359 = vmatpush1.msra.mxu0 0.0
    %360 = vmatprep.subr.mxu0 0.0
    %361 = vmatpush1.msra.mxu0 0.0
    %362 = vmatprep.subr.mxu0 0.0
    %363 = vmatpush1.msra.mxu0 0.0
    %364 = vmatprep.subr.mxu0 0.0
    %365 = vmatpush1.msra.mxu0 0.0
    %366 = vmatprep.subr.mxu0 0.0
    %367 = vmatpush1.msra.mxu0 0.0
    %368 = vmatprep.subr.mxu0 0.0
    %369 = vmatpush1.msra.mxu0 0.0
    %370 = vmatprep.subr.mxu0 0.0
    %371 = vmatpush1.msra.mxu0 0.0
    %372 = vmatprep.subr.mxu0 0.0
    %373 = vmatpush1.msra.mxu0 0.0
    %374 = vmatprep.subr.mxu0 0.0
    %375 = vmatpush1.msra.mxu0 0.0
    %376 = vmatprep.subr.mxu0 0.0
    %377 = vmatpush1.msra.mxu0 0.0
    %378 = vmatprep.subr.mxu0 0.0
    %379 = vmatpush1.msra.mxu0 0.0
    %380 = vmatprep.subr.mxu0 0.0
    %381 = vmatpush1.msra.mxu0 0.0
    %382 = vmatprep.subr.mxu0 0.0
    %383 = vmatpush1.msra.mxu0 0.0
    %384 = vmatprep.subr.mxu0 0.0
    %385 = vmatpush1.msra.mxu0 0.0
    %386 = vmatprep.subr.mxu0 0.0
    %387 = vmatpush1.msra.mxu0 0.0
    %388 = vmatprep.subr.mxu0 0.0
    %389 = vmatpush1.msra.mxu0 0.0
    %390 = vmatprep.subr.mxu0 0.0
    %391 = vmatpush1.msra.mxu0 0.0
    %392 = vmatprep.subr.mxu0 0.0
    %393 = vmatpush1.msra.mxu0 0.0
    %394 = vmatprep.subr.mxu0 0.0
    %395 = vmatpush1.msra.mxu0 0.0
    %396 = vmatprep.subr.mxu0 0.0
    %397 = vmatpush1.msra.mxu0 0.0
    %398 = vmatprep.subr.mxu0 0.0
    %399 = vmatpush1.msra.mxu0 0.0
    %400 = vmatprep.subr.mxu0 0.0
    %401 = vmatpush1.msra.mxu0 0.0
    %402 = vmatprep.subr.mxu0 0.0
    %403 = vmatpush1.msra.mxu0 0.0
    %404 = vmatprep.subr.mxu0 0.0
    %405 = vmatpush1.msra.mxu0 0.0
    %406 = vmatprep.subr.mxu0 0.0
    %407 = vmatpush1.msra.mxu0 0.0
    %408 = vmatprep.subr.mxu0 0.0
    %409 = vmatpush1.msra.mxu0 0.0
    %410 = vmatprep.subr.mxu0 0.0
    %411 = vmatpush1.msra.mxu0 0.0
    %412 = vmatprep.mubr.f32.mxu0 0.0
    %413 = vmatmul.mubr.f32.gmra.mrb[0].mxu0 %v346
    %v414 = vpop.f32.mrb[0].mxu0
    %v415 = vadd.f32 0.0, %v414
    %v416 = vpop.f32.mrb[0].mxu0
    %417 = vdwg.mxu0
    %v418 = vadd.f32 %v211, %v415
    %v419 = vxor.u32 %v418, 2147483648
    %v420 = vmul.f32 %v419, 1.442695
    %v421 = vpow.pop %v420
    %v422 = vadd.f32 %v421, 1.0
    %v423 = vrcp.pop %v422
    %v424 = vmul.f32 1.0, %v423
    %v425 = vtanh.pop %v418
    %v426 = vmul.f32 %v424, %v336
    %428 = vrot.lane.b32.xlu0 %v425, 64
    %v429 = vpop.permute.xlu0 %428
    %v431 = vmul.f32 %v424, %v429
    %433 = vrot.lane.b32.xlu0 %v431, 32
    %v434 = vpop.permute.xlu0 %433
    %v436 = vadd.f32 %v426, %v434
    %v437 = vtanh.pop %v436
    %439 = vrot.lane.b32.xlu0 %v437, 64
    %v440 = vpop.permute.xlu0 %439
    %v442 = vmul.f32 %v424, %v440
    %444 = vrot.lane.b32.xlu0 %v442, 32
    %v445 = vpop.permute.xlu0 %444
    %v446 = vsel %vm244, %v445, 0
    %448 = vmatprep.subr.mxu0 0.0
    %449 = vmatpush1.msra.mxu0 %v99
    %450 = vmatprep.subr.mxu0 0.0
    %451 = vmatpush1.msra.mxu0 %v100
    %452 = vmatprep.subr.mxu0 0.0
    %453 = vmatpush1.msra.mxu0 %v101
    %454 = vmatprep.subr.mxu0 0.0
    %455 = vmatpush1.msra.mxu0 %v102
    %456 = vmatprep.subr.mxu0 0.0
    %457 = vmatpush1.msra.mxu0 0.0
    %458 = vmatprep.subr.mxu0 0.0
    %459 = vmatpush1.msra.mxu0 0.0
    %460 = vmatprep.subr.mxu0 0.0
    %461 = vmatpush1.msra.mxu0 0.0
    %462 = vmatprep.subr.mxu0 0.0
    %463 = vmatpush1.msra.mxu0 0.0
    %464 = vmatprep.subr.mxu0 0.0
    %465 = vmatpush1.msra.mxu0 0.0
    %466 = vmatprep.subr.mxu0 0.0
    %467 = vmatpush1.msra.mxu0 0.0
    %468 = vmatprep.subr.mxu0 0.0
    %469 = vmatpush1.msra.mxu0 0.0
    %470 = vmatprep.subr.mxu0 0.0
    %471 = vmatpush1.msra.mxu0 0.0
    %472 = vmatprep.subr.mxu0 0.0
    %473 = vmatpush1.msra.mxu0 0.0
    %474 = vmatprep.subr.mxu0 0.0
    %475 = vmatpush1.msra.mxu0 0.0
    %476 = vmatprep.subr.mxu0 0.0
    %477 = vmatpush1.msra.mxu0 0.0
    %478 = vmatprep.subr.mxu0 0.0
    %479 = vmatpush1.msra.mxu0 0.0
    %480 = vmatprep.subr.mxu0 0.0
    %481 = vmatpush1.msra.mxu0 0.0
    %482 = vmatprep.subr.mxu0 0.0
    %483 = vmatpush1.msra.mxu0 0.0
    %484 = vmatprep.subr.mxu0 0.0
    %485 = vmatpush1.msra.mxu0 0.0
    %486 = vmatprep.subr.mxu0 0.0
    %487 = vmatpush1.msra.mxu0 0.0
    %488 = vmatprep.subr.mxu0 0.0
    %489 = vmatpush1.msra.mxu0 0.0
    %490 = vmatprep.subr.mxu0 0.0
    %491 = vmatpush1.msra.mxu0 0.0
    %492 = vmatprep.subr.mxu0 0.0
    %493 = vmatpush1.msra.mxu0 0.0
    %494 = vmatprep.subr.mxu0 0.0
    %495 = vmatpush1.msra.mxu0 0.0
    %496 = vmatprep.subr.mxu0 0.0
    %497 = vmatpush1.msra.mxu0 0.0
    %498 = vmatprep.subr.mxu0 0.0
    %499 = vmatpush1.msra.mxu0 0.0
    %500 = vmatprep.subr.mxu0 0.0
    %501 = vmatpush1.msra.mxu0 0.0
    %502 = vmatprep.subr.mxu0 0.0
    %503 = vmatpush1.msra.mxu0 0.0
    %504 = vmatprep.subr.mxu0 0.0
    %505 = vmatpush1.msra.mxu0 0.0
    %506 = vmatprep.subr.mxu0 0.0
    %507 = vmatpush1.msra.mxu0 0.0
    %508 = vmatprep.subr.mxu0 0.0
    %509 = vmatpush1.msra.mxu0 0.0
    %510 = vmatprep.subr.mxu0 0.0
    %511 = vmatpush1.msra.mxu0 0.0
    %512 = vmatprep.mubr.f32.mxu0 0.0
    %513 = vmatmul.mubr.f32.gmra.mrb[0].mxu0 %v446
    %v514 = vpop.f32.mrb[0].mxu0
    %v515 = vadd.f32 0.0, %v514
    %v516 = vpop.f32.mrb[0].mxu0
    %517 = vdwg.mxu0
    %v518 = vadd.f32 %v216, %v515
    %v519 = vxor.u32 %v518, 2147483648
    %v520 = vmul.f32 %v519, 1.442695
    %v521 = vpow.pop %v520
    %v522 = vadd.f32 %v521, 1.0
    %v523 = vrcp.pop %v522
    %v524 = vmul.f32 1.0, %v523
    %v525 = vtanh.pop %v518
    %v526 = vmul.f32 %v524, %v436
    %528 = vrot.lane.b32.xlu0 %v525, 64
    %v529 = vpop.permute.xlu0 %528
    %v531 = vmul.f32 %v524, %v529
    %533 = vrot.lane.b32.xlu0 %v531, 32
    %v534 = vpop.permute.xlu0 %533
    %v536 = vadd.f32 %v526, %v534
    %v537 = vtanh.pop %v536
    %539 = vrot.lane.b32.xlu0 %v537, 64
    %v540 = vpop.permute.xlu0 %539
    %v542 = vmul.f32 %v524, %v540
    %544 = vrot.lane.b32.xlu0 %v542, 32
    %v545 = vpop.permute.xlu0 %544
    %v546 = vsel %vm244, %v545, 0
    %548 = vmatprep.subr.mxu0 0.0
    %549 = vmatpush1.msra.mxu0 %v99
    %550 = vmatprep.subr.mxu0 0.0
    %551 = vmatpush1.msra.mxu0 %v100
    %552 = vmatprep.subr.mxu0 0.0
    %553 = vmatpush1.msra.mxu0 %v101
    %554 = vmatprep.subr.mxu0 0.0
    %555 = vmatpush1.msra.mxu0 %v102
    %556 = vmatprep.subr.mxu0 0.0
    %557 = vmatpush1.msra.mxu0 0.0
    %558 = vmatprep.subr.mxu0 0.0
    %559 = vmatpush1.msra.mxu0 0.0
    %560 = vmatprep.subr.mxu0 0.0
    %561 = vmatpush1.msra.mxu0 0.0
    %562 = vmatprep.subr.mxu0 0.0
    %563 = vmatpush1.msra.mxu0 0.0
    %564 = vmatprep.subr.mxu0 0.0
    %565 = vmatpush1.msra.mxu0 0.0
    %566 = vmatprep.subr.mxu0 0.0
    %567 = vmatpush1.msra.mxu0 0.0
    %568 = vmatprep.subr.mxu0 0.0
    %569 = vmatpush1.msra.mxu0 0.0
    %570 = vmatprep.subr.mxu0 0.0
    %571 = vmatpush1.msra.mxu0 0.0
    %572 = vmatprep.subr.mxu0 0.0
    %573 = vmatpush1.msra.mxu0 0.0
    %574 = vmatprep.subr.mxu0 0.0
    %575 = vmatpush1.msra.mxu0 0.0
    %576 = vmatprep.subr.mxu0 0.0
    %577 = vmatpush1.msra.mxu0 0.0
    %578 = vmatprep.subr.mxu0 0.0
    %579 = vmatpush1.msra.mxu0 0.0
    %580 = vmatprep.subr.mxu0 0.0
    %581 = vmatpush1.msra.mxu0 0.0
    %582 = vmatprep.subr.mxu0 0.0
    %583 = vmatpush1.msra.mxu0 0.0
    %584 = vmatprep.subr.mxu0 0.0
    %585 = vmatpush1.msra.mxu0 0.0
    %586 = vmatprep.subr.mxu0 0.0
    %587 = vmatpush1.msra.mxu0 0.0
    %588 = vmatprep.subr.mxu0 0.0
    %589 = vmatpush1.msra.mxu0 0.0
    %590 = vmatprep.subr.mxu0 0.0
    %591 = vmatpush1.msra.mxu0 0.0
    %592 = vmatprep.subr.mxu0 0.0
    %593 = vmatpush1.msra.mxu0 0.0
    %594 = vmatprep.subr.mxu0 0.0
    %595 = vmatpush1.msra.mxu0 0.0
    %596 = vmatprep.subr.mxu0 0.0
    %597 = vmatpush1.msra.mxu0 0.0
    %598 = vmatprep.subr.mxu0 0.0
    %599 = vmatpush1.msra.mxu0 0.0
    %600 = vmatprep.subr.mxu0 0.0
    %601 = vmatpush1.msra.mxu0 0.0
    %602 = vmatprep.subr.mxu0 0.0
    %603 = vmatpush1.msra.mxu0 0.0
    %604 = vmatprep.subr.mxu0 0.0
    %605 = vmatpush1.msra.mxu0 0.0
    %606 = vmatprep.subr.mxu0 0.0
    %607 = vmatpush1.msra.mxu0 0.0
    %608 = vmatprep.subr.mxu0 0.0
    %609 = vmatpush1.msra.mxu0 0.0
    %610 = vmatprep.subr.mxu0 0.0
    %611 = vmatpush1.msra.mxu0 0.0
    %612 = vmatprep.mubr.f32.mxu0 0.0
    %613 = vmatmul.mubr.f32.gmra.mrb[0].mxu0 %v546
    %v614 = vpop.f32.mrb[0].mxu0
    %v615 = vadd.f32 0.0, %v614
    %v616 = vpop.f32.mrb[0].mxu0
    %617 = vdwg.mxu0
    %v618 = vadd.f32 %v221, %v615
    %v619 = vxor.u32 %v618, 2147483648
    %v620 = vmul.f32 %v619, 1.442695
    %v621 = vpow.pop %v620
    %v622 = vadd.f32 %v621, 1.0
    %v623 = vrcp.pop %v622
    %v624 = vmul.f32 1.0, %v623
    %v625 = vtanh.pop %v618
    %v626 = vmul.f32 %v624, %v536
    %628 = vrot.lane.b32.xlu0 %v625, 64
    %v629 = vpop.permute.xlu0 %628
    %v631 = vmul.f32 %v624, %v629
    %633 = vrot.lane.b32.xlu0 %v631, 32
    %v634 = vpop.permute.xlu0 %633
    %v636 = vadd.f32 %v626, %v634
    %v637 = vtanh.pop %v636
    %639 = vrot.lane.b32.xlu0 %v637, 64
    %v640 = vpop.permute.xlu0 %639
    %v642 = vmul.f32 %v624, %v640
    %644 = vrot.lane.b32.xlu0 %v642, 32
    %v645 = vpop.permute.xlu0 %644
    %v646 = vsel %vm244, %v645, 0
    %648 = vmatprep.subr.mxu0 0.0
    %649 = vmatpush1.msra.mxu0 %v99
    %650 = vmatprep.subr.mxu0 0.0
    %651 = vmatpush1.msra.mxu0 %v100
    %652 = vmatprep.subr.mxu0 0.0
    %653 = vmatpush1.msra.mxu0 %v101
    %654 = vmatprep.subr.mxu0 0.0
    %655 = vmatpush1.msra.mxu0 %v102
    %656 = vmatprep.subr.mxu0 0.0
    %657 = vmatpush1.msra.mxu0 0.0
    %658 = vmatprep.subr.mxu0 0.0
    %659 = vmatpush1.msra.mxu0 0.0
    %660 = vmatprep.subr.mxu0 0.0
    %661 = vmatpush1.msra.mxu0 0.0
    %662 = vmatprep.subr.mxu0 0.0
    %663 = vmatpush1.msra.mxu0 0.0
    %664 = vmatprep.subr.mxu0 0.0
    %665 = vmatpush1.msra.mxu0 0.0
    %666 = vmatprep.subr.mxu0 0.0
    %667 = vmatpush1.msra.mxu0 0.0
    %668 = vmatprep.subr.mxu0 0.0
    %669 = vmatpush1.msra.mxu0 0.0
    %670 = vmatprep.subr.mxu0 0.0
    %671 = vmatpush1.msra.mxu0 0.0
    %672 = vmatprep.subr.mxu0 0.0
    %673 = vmatpush1.msra.mxu0 0.0
    %674 = vmatprep.subr.mxu0 0.0
    %675 = vmatpush1.msra.mxu0 0.0
    %676 = vmatprep.subr.mxu0 0.0
    %677 = vmatpush1.msra.mxu0 0.0
    %678 = vmatprep.subr.mxu0 0.0
    %679 = vmatpush1.msra.mxu0 0.0
    %680 = vmatprep.subr.mxu0 0.0
    %681 = vmatpush1.msra.mxu0 0.0
    %682 = vmatprep.subr.mxu0 0.0
    %683 = vmatpush1.msra.mxu0 0.0
    %684 = vmatprep.subr.mxu0 0.0
    %685 = vmatpush1.msra.mxu0 0.0
    %686 = vmatprep.subr.mxu0 0.0
    %687 = vmatpush1.msra.mxu0 0.0
    %688 = vmatprep.subr.mxu0 0.0
    %689 = vmatpush1.msra.mxu0 0.0
    %690 = vmatprep.subr.mxu0 0.0
    %691 = vmatpush1.msra.mxu0 0.0
    %692 = vmatprep.subr.mxu0 0.0
    %693 = vmatpush1.msra.mxu0 0.0
    %694 = vmatprep.subr.mxu0 0.0
    %695 = vmatpush1.msra.mxu0 0.0
    %696 = vmatprep.subr.mxu0 0.0
    %697 = vmatpush1.msra.mxu0 0.0
    %698 = vmatprep.subr.mxu0 0.0
    %699 = vmatpush1.msra.mxu0 0.0
    %700 = vmatprep.subr.mxu0 0.0
    %701 = vmatpush1.msra.mxu0 0.0
    %702 = vmatprep.subr.mxu0 0.0
    %703 = vmatpush1.msra.mxu0 0.0
    %704 = vmatprep.subr.mxu0 0.0
    %705 = vmatpush1.msra.mxu0 0.0
    %706 = vmatprep.subr.mxu0 0.0
    %707 = vmatpush1.msra.mxu0 0.0
    %708 = vmatprep.subr.mxu0 0.0
    %709 = vmatpush1.msra.mxu0 0.0
    %710 = vmatprep.subr.mxu0 0.0
    %711 = vmatpush1.msra.mxu0 0.0
    %712 = vmatprep.mubr.f32.mxu0 0.0
    %713 = vmatmul.mubr.f32.gmra.mrb[0].mxu0 %v646
    %v714 = vpop.f32.mrb[0].mxu0
    %v715 = vadd.f32 0.0, %v714
    %v716 = vpop.f32.mrb[0].mxu0
    %717 = vdwg.mxu0
    %v718 = vadd.f32 %v226, %v715
    %v719 = vxor.u32 %v718, 2147483648
    %v720 = vmul.f32 %v719, 1.442695
    %v721 = vpow.pop %v720
    %v722 = vadd.f32 %v721, 1.0
    %v723 = vrcp.pop %v722
    %v724 = vmul.f32 1.0, %v723
    %v725 = vtanh.pop %v718
    %v726 = vmul.f32 %v724, %v636
    %728 = vrot.lane.b32.xlu0 %v725, 64
    %v729 = vpop.permute.xlu0 %728
    %v731 = vmul.f32 %v724, %v729
    %733 = vrot.lane.b32.xlu0 %v731, 32
    %v734 = vpop.permute.xlu0 %733
    %v736 = vadd.f32 %v726, %v734
    %v737 = vtanh.pop %v736
    %739 = vrot.lane.b32.xlu0 %v737, 64
    %v740 = vpop.permute.xlu0 %739
    %v742 = vmul.f32 %v724, %v740
    %744 = vrot.lane.b32.xlu0 %v742, 32
    %v745 = vpop.permute.xlu0 %744
    %v746 = vsel %vm244, %v745, 0
    %748 = vmatprep.subr.mxu0 0.0
    %749 = vmatpush1.msra.mxu0 %v99
    %750 = vmatprep.subr.mxu0 0.0
    %751 = vmatpush1.msra.mxu0 %v100
    %752 = vmatprep.subr.mxu0 0.0
    %753 = vmatpush1.msra.mxu0 %v101
    %754 = vmatprep.subr.mxu0 0.0
    %755 = vmatpush1.msra.mxu0 %v102
    %756 = vmatprep.subr.mxu0 0.0
    %757 = vmatpush1.msra.mxu0 0.0
    %758 = vmatprep.subr.mxu0 0.0
    %759 = vmatpush1.msra.mxu0 0.0
    %760 = vmatprep.subr.mxu0 0.0
    %761 = vmatpush1.msra.mxu0 0.0
    %762 = vmatprep.subr.mxu0 0.0
    %763 = vmatpush1.msra.mxu0 0.0
    %764 = vmatprep.subr.mxu0 0.0
    %765 = vmatpush1.msra.mxu0 0.0
    %766 = vmatprep.subr.mxu0 0.0
    %767 = vmatpush1.msra.mxu0 0.0
    %768 = vmatprep.subr.mxu0 0.0
    %769 = vmatpush1.msra.mxu0 0.0
    %770 = vmatprep.subr.mxu0 0.0
    %771 = vmatpush1.msra.mxu0 0.0
    %772 = vmatprep.subr.mxu0 0.0
    %773 = vmatpush1.msra.mxu0 0.0
    %774 = vmatprep.subr.mxu0 0.0
    %775 = vmatpush1.msra.mxu0 0.0
    %776 = vmatprep.subr.mxu0 0.0
    %777 = vmatpush1.msra.mxu0 0.0
    %778 = vmatprep.subr.mxu0 0.0
    %779 = vmatpush1.msra.mxu0 0.0
    %780 = vmatprep.subr.mxu0 0.0
    %781 = vmatpush1.msra.mxu0 0.0
    %782 = vmatprep.subr.mxu0 0.0
    %783 = vmatpush1.msra.mxu0 0.0
    %784 = vmatprep.subr.mxu0 0.0
    %785 = vmatpush1.msra.mxu0 0.0
    %786 = vmatprep.subr.mxu0 0.0
    %787 = vmatpush1.msra.mxu0 0.0
    %788 = vmatprep.subr.mxu0 0.0
    %789 = vmatpush1.msra.mxu0 0.0
    %790 = vmatprep.subr.mxu0 0.0
    %791 = vmatpush1.msra.mxu0 0.0
    %792 = vmatprep.subr.mxu0 0.0
    %793 = vmatpush1.msra.mxu0 0.0
    %794 = vmatprep.subr.mxu0 0.0
    %795 = vmatpush1.msra.mxu0 0.0
    %796 = vmatprep.subr.mxu0 0.0
    %797 = vmatpush1.msra.mxu0 0.0
    %798 = vmatprep.subr.mxu0 0.0
    %799 = vmatpush1.msra.mxu0 0.0
    %800 = vmatprep.subr.mxu0 0.0
    %801 = vmatpush1.msra.mxu0 0.0
    %802 = vmatprep.subr.mxu0 0.0
    %803 = vmatpush1.msra.mxu0 0.0
    %804 = vmatprep.subr.mxu0 0.0
    %805 = vmatpush1.msra.mxu0 0.0
    %806 = vmatprep.subr.mxu0 0.0
    %807 = vmatpush1.msra.mxu0 0.0
    %808 = vmatprep.subr.mxu0 0.0
    %809 = vmatpush1.msra.mxu0 0.0
    %810 = vmatprep.subr.mxu0 0.0
    %811 = vmatpush1.msra.mxu0 0.0
    %812 = vmatprep.mubr.f32.mxu0 0.0
    %813 = vmatmul.mubr.f32.gmra.mrb[0].mxu0 %v746
    %v814 = vpop.f32.mrb[0].mxu0
    %v815 = vadd.f32 0.0, %v814
    %v816 = vpop.f32.mrb[0].mxu0
    %817 = vdwg.mxu0
    %v818 = vadd.f32 %v231, %v815
    %v819 = vxor.u32 %v818, 2147483648
    %v820 = vmul.f32 %v819, 1.442695
    %v821 = vpow.pop %v820
    %v822 = vadd.f32 %v821, 1.0
    %v823 = vrcp.pop %v822
    %v824 = vmul.f32 1.0, %v823
    %v825 = vtanh.pop %v818
    %v826 = vmul.f32 %v824, %v736
    %828 = vrot.lane.b32.xlu0 %v825, 64
    %v829 = vpop.permute.xlu0 %828
    %v831 = vmul.f32 %v824, %v829
    %833 = vrot.lane.b32.xlu0 %v831, 32
    %v834 = vpop.permute.xlu0 %833
    %v836 = vadd.f32 %v826, %v834
    %v837 = vtanh.pop %v836
    %839 = vrot.lane.b32.xlu0 %v837, 64
    %v840 = vpop.permute.xlu0 %839
    %v842 = vmul.f32 %v824, %v840
    %844 = vrot.lane.b32.xlu0 %v842, 32
    %v845 = vpop.permute.xlu0 %844
    %v846 = vsel %vm244, %v845, 0
    %848 = vmatprep.subr.mxu0 0.0
    %849 = vmatpush1.msra.mxu0 %v99
    %850 = vmatprep.subr.mxu0 0.0
    %851 = vmatpush1.msra.mxu0 %v100
    %852 = vmatprep.subr.mxu0 0.0
    %853 = vmatpush1.msra.mxu0 %v101
    %854 = vmatprep.subr.mxu0 0.0
    %855 = vmatpush1.msra.mxu0 %v102
    %856 = vmatprep.subr.mxu0 0.0
    %857 = vmatpush1.msra.mxu0 0.0
    %858 = vmatprep.subr.mxu0 0.0
    %859 = vmatpush1.msra.mxu0 0.0
    %860 = vmatprep.subr.mxu0 0.0
    %861 = vmatpush1.msra.mxu0 0.0
    %862 = vmatprep.subr.mxu0 0.0
    %863 = vmatpush1.msra.mxu0 0.0
    %864 = vmatprep.subr.mxu0 0.0
    %865 = vmatpush1.msra.mxu0 0.0
    %866 = vmatprep.subr.mxu0 0.0
    %867 = vmatpush1.msra.mxu0 0.0
    %868 = vmatprep.subr.mxu0 0.0
    %869 = vmatpush1.msra.mxu0 0.0
    %870 = vmatprep.subr.mxu0 0.0
    %871 = vmatpush1.msra.mxu0 0.0
    %872 = vmatprep.subr.mxu0 0.0
    %873 = vmatpush1.msra.mxu0 0.0
    %874 = vmatprep.subr.mxu0 0.0
    %875 = vmatpush1.msra.mxu0 0.0
    %876 = vmatprep.subr.mxu0 0.0
    %877 = vmatpush1.msra.mxu0 0.0
    %878 = vmatprep.subr.mxu0 0.0
    %879 = vmatpush1.msra.mxu0 0.0
    %880 = vmatprep.subr.mxu0 0.0
    %881 = vmatpush1.msra.mxu0 0.0
    %882 = vmatprep.subr.mxu0 0.0
    %883 = vmatpush1.msra.mxu0 0.0
    %884 = vmatprep.subr.mxu0 0.0
    %885 = vmatpush1.msra.mxu0 0.0
    %886 = vmatprep.subr.mxu0 0.0
    %887 = vmatpush1.msra.mxu0 0.0
    %888 = vmatprep.subr.mxu0 0.0
    %889 = vmatpush1.msra.mxu0 0.0
    %890 = vmatprep.subr.mxu0 0.0
    %891 = vmatpush1.msra.mxu0 0.0
    %892 = vmatprep.subr.mxu0 0.0
    %893 = vmatpush1.msra.mxu0 0.0
    %894 = vmatprep.subr.mxu0 0.0
    %895 = vmatpush1.msra.mxu0 0.0
    %896 = vmatprep.subr.mxu0 0.0
    %897 = vmatpush1.msra.mxu0 0.0
    %898 = vmatprep.subr.mxu0 0.0
    %899 = vmatpush1.msra.mxu0 0.0
    %900 = vmatprep.subr.mxu0 0.0
    %901 = vmatpush1.msra.mxu0 0.0
    %902 = vmatprep.subr.mxu0 0.0
    %903 = vmatpush1.msra.mxu0 0.0
    %904 = vmatprep.subr.mxu0 0.0
    %905 = vmatpush1.msra.mxu0 0.0
    %906 = vmatprep.subr.mxu0 0.0
    %907 = vmatpush1.msra.mxu0 0.0
    %908 = vmatprep.subr.mxu0 0.0
    %909 = vmatpush1.msra.mxu0 0.0
    %910 = vmatprep.subr.mxu0 0.0
    %911 = vmatpush1.msra.mxu0 0.0
    %912 = vmatprep.mubr.f32.mxu0 0.0
    %913 = vmatmul.mubr.f32.gmra.mrb[0].mxu0 %v846
    %v914 = vpop.f32.mrb[0].mxu0
    %v915 = vadd.f32 0.0, %v914
    %v916 = vpop.f32.mrb[0].mxu0
    %917 = vdwg.mxu0
    %v918 = vadd.f32 %v236, %v915
    %v919 = vxor.u32 %v918, 2147483648
    %v920 = vmul.f32 %v919, 1.442695
    %v921 = vpow.pop %v920
    %v922 = vadd.f32 %v921, 1.0
    %v923 = vrcp.pop %v922
    %v924 = vmul.f32 1.0, %v923
    %v925 = vtanh.pop %v918
    %v926 = vmul.f32 %v924, %v836
    %928 = vrot.lane.b32.xlu0 %v925, 64
    %v929 = vpop.permute.xlu0 %928
    %v931 = vmul.f32 %v924, %v929
    %933 = vrot.lane.b32.xlu0 %v931, 32
    %v934 = vpop.permute.xlu0 %933
    %v936 = vadd.f32 %v926, %v934
    %v937 = vtanh.pop %v936
    %939 = vrot.lane.b32.xlu0 %v937, 64
    %v940 = vpop.permute.xlu0 %939
    %v942 = vmul.f32 %v924, %v940
    %944 = vrot.lane.b32.xlu0 %v942, 32
    %v945 = vpop.permute.xlu0 %944
    %v946 = vsel %vm244, %v945, 0
    %948 = vmatprep.subr.mxu0 0.0
    %949 = vmatpush1.msra.mxu0 %v99
    %950 = vmatprep.subr.mxu0 0.0
    %951 = vmatpush1.msra.mxu0 %v100
    %952 = vmatprep.subr.mxu0 0.0
    %953 = vmatpush1.msra.mxu0 %v101
    %954 = vmatprep.subr.mxu0 0.0
    %955 = vmatpush1.msra.mxu0 %v102
    %956 = vmatprep.subr.mxu0 0.0
    %957 = vmatpush1.msra.mxu0 0.0
    %958 = vmatprep.subr.mxu0 0.0
    %959 = vmatpush1.msra.mxu0 0.0
    %960 = vmatprep.subr.mxu0 0.0
    %961 = vmatpush1.msra.mxu0 0.0
    %962 = vmatprep.subr.mxu0 0.0
    %963 = vmatpush1.msra.mxu0 0.0
    %964 = vmatprep.subr.mxu0 0.0
    %965 = vmatpush1.msra.mxu0 0.0
    %966 = vmatprep.subr.mxu0 0.0
    %967 = vmatpush1.msra.mxu0 0.0
    %968 = vmatprep.subr.mxu0 0.0
    %969 = vmatpush1.msra.mxu0 0.0
    %970 = vmatprep.subr.mxu0 0.0
    %971 = vmatpush1.msra.mxu0 0.0
    %972 = vmatprep.subr.mxu0 0.0
    %973 = vmatpush1.msra.mxu0 0.0
    %974 = vmatprep.subr.mxu0 0.0
    %975 = vmatpush1.msra.mxu0 0.0
    %976 = vmatprep.subr.mxu0 0.0
    %977 = vmatpush1.msra.mxu0 0.0
    %978 = vmatprep.subr.mxu0 0.0
    %979 = vmatpush1.msra.mxu0 0.0
    %980 = vmatprep.subr.mxu0 0.0
    %981 = vmatpush1.msra.mxu0 0.0
    %982 = vmatprep.subr.mxu0 0.0
    %983 = vmatpush1.msra.mxu0 0.0
    %984 = vmatprep.subr.mxu0 0.0
    %985 = vmatpush1.msra.mxu0 0.0
    %986 = vmatprep.subr.mxu0 0.0
    %987 = vmatpush1.msra.mxu0 0.0
    %988 = vmatprep.subr.mxu0 0.0
    %989 = vmatpush1.msra.mxu0 0.0
    %990 = vmatprep.subr.mxu0 0.0
    %991 = vmatpush1.msra.mxu0 0.0
    %992 = vmatprep.subr.mxu0 0.0
    %993 = vmatpush1.msra.mxu0 0.0
    %994 = vmatprep.subr.mxu0 0.0
    %995 = vmatpush1.msra.mxu0 0.0
    %996 = vmatprep.subr.mxu0 0.0
    %997 = vmatpush1.msra.mxu0 0.0
    %998 = vmatprep.subr.mxu0 0.0
    %999 = vmatpush1.msra.mxu0 0.0
    %1000 = vmatprep.subr.mxu0 0.0
    %1001 = vmatpush1.msra.mxu0 0.0
    %1002 = vmatprep.subr.mxu0 0.0
    %1003 = vmatpush1.msra.mxu0 0.0
    %1004 = vmatprep.subr.mxu0 0.0
    %1005 = vmatpush1.msra.mxu0 0.0
    %1006 = vmatprep.subr.mxu0 0.0
    %1007 = vmatpush1.msra.mxu0 0.0
    %1008 = vmatprep.subr.mxu0 0.0
    %1009 = vmatpush1.msra.mxu0 0.0
    %1010 = vmatprep.subr.mxu0 0.0
    %1011 = vmatpush1.msra.mxu0 0.0
    %1012 = vmatprep.mubr.f32.mxu0 0.0
    %1013 = vmatmul.mubr.f32.gmra.mrb[0].mxu0 %v946
    %v1014 = vpop.f32.mrb[0].mxu0
    %v1015 = vadd.f32 0.0, %v1014
    %v1016 = vpop.f32.mrb[0].mxu0
    %1017 = vdwg.mxu0
    %v1018 = vadd.f32 %v241, %v1015
    %v1019 = vxor.u32 %v1018, 2147483648
    %v1020 = vmul.f32 %v1019, 1.442695
    %v1021 = vpow.pop %v1020
    %v1022 = vadd.f32 %v1021, 1.0
    %v1023 = vrcp.pop %v1022
    %v1024 = vmul.f32 1.0, %v1023
    %v1025 = vtanh.pop %v1018
    %v1026 = vmul.f32 %v1024, %v936
    %1028 = vrot.lane.b32.xlu0 %v1025, 64
    %v1029 = vpop.permute.xlu0 %1028
    %v1031 = vmul.f32 %v1024, %v1029
    %1033 = vrot.lane.b32.xlu0 %v1031, 32
    %v1034 = vpop.permute.xlu0 %1033
    %v1036 = vadd.f32 %v1026, %v1034
    %v1037 = vtanh.pop %v1036
    %1039 = vrot.lane.b32.xlu0 %v1037, 64
    %v1040 = vpop.permute.xlu0 %1039
    %v1042 = vmul.f32 %v1024, %v1040
    %v1043 = vld [vmem:[%s4] sm:$0xff]
    %v1044 = vld [vmem:[%s4 + $0x8] sm:$0xff]
    %v1045 = vld [vmem:[%s4 + $0x10] sm:$0xff]
    %v1046 = vld [vmem:[%s4 + $0x18] sm:$0xff]
    %v1047 = vld [vmem:[#allocation5] sm:$0xff]
    %v1048 = vld [vmem:[#allocation5 + $0x8] sm:$0xff]
    %v1049 = vld [vmem:[#allocation5 + $0x10] sm:$0xff]
    %v1050 = vld [vmem:[#allocation5 + $0x18] sm:$0xff]
    %v1051 = vld [vmem:[%s6] sm:$0x1]
    %v1053 = vlaneseq
    %v1054 = vshrl.u32 %v1053, 7
    %v1055 = vsub.s32 0, %v1054
    %v1056 = vrot.slane %v1051, %v1055
    %1059 = vrot.lane.b32.xlu0 %v1042, 32
    %v1060 = vpop.permute.xlu0 %1059
    %v1061 = vsel %vm244, %v1060, 0
    %1063 = vmatprep.subr.mxu0 0.0
    %1064 = vmatpush1.msra.mxu0 %v1043
    %1065 = vmatprep.subr.mxu0 0.0
    %1066 = vmatpush1.msra.mxu0 %v1044
    %1067 = vmatprep.subr.mxu0 0.0
    %1068 = vmatpush1.msra.mxu0 %v1045
    %1069 = vmatprep.subr.mxu0 0.0
    %1070 = vmatpush1.msra.mxu0 %v1046
    %1071 = vmatprep.subr.mxu0 0.0
    %1072 = vmatpush1.msra.mxu0 0.0
    %1073 = vmatprep.subr.mxu0 0.0
    %1074 = vmatpush1.msra.mxu0 0.0
    %1075 = vmatprep.subr.mxu0 0.0
    %1076 = vmatpush1.msra.mxu0 0.0
    %1077 = vmatprep.subr.mxu0 0.0
    %1078 = vmatpush1.msra.mxu0 0.0
    %1079 = vmatprep.subr.mxu0 0.0
    %1080 = vmatpush1.msra.mxu0 0.0
    %1081 = vmatprep.subr.mxu0 0.0
    %1082 = vmatpush1.msra.mxu0 0.0
    %1083 = vmatprep.subr.mxu0 0.0
    %1084 = vmatpush1.msra.mxu0 0.0
    %1085 = vmatprep.subr.mxu0 0.0
    %1086 = vmatpush1.msra.mxu0 0.0
    %1087 = vmatprep.subr.mxu0 0.0
    %1088 = vmatpush1.msra.mxu0 0.0
    %1089 = vmatprep.subr.mxu0 0.0
    %1090 = vmatpush1.msra.mxu0 0.0
    %1091 = vmatprep.subr.mxu0 0.0
    %1092 = vmatpush1.msra.mxu0 0.0
    %1093 = vmatprep.subr.mxu0 0.0
    %1094 = vmatpush1.msra.mxu0 0.0
    %1095 = vmatprep.subr.mxu0 0.0
    %1096 = vmatpush1.msra.mxu0 0.0
    %1097 = vmatprep.subr.mxu0 0.0
    %1098 = vmatpush1.msra.mxu0 0.0
    %1099 = vmatprep.subr.mxu0 0.0
    %1100 = vmatpush1.msra.mxu0 0.0
    %1101 = vmatprep.subr.mxu0 0.0
    %1102 = vmatpush1.msra.mxu0 0.0
    %1103 = vmatprep.subr.mxu0 0.0
    %1104 = vmatpush1.msra.mxu0 0.0
    %1105 = vmatprep.subr.mxu0 0.0
    %1106 = vmatpush1.msra.mxu0 0.0
    %1107 = vmatprep.subr.mxu0 0.0
    %1108 = vmatpush1.msra.mxu0 0.0
    %1109 = vmatprep.subr.mxu0 0.0
    %1110 = vmatpush1.msra.mxu0 0.0
    %1111 = vmatprep.subr.mxu0 0.0
    %1112 = vmatpush1.msra.mxu0 0.0
    %1113 = vmatprep.subr.mxu0 0.0
    %1114 = vmatpush1.msra.mxu0 0.0
    %1115 = vmatprep.subr.mxu0 0.0
    %1116 = vmatpush1.msra.mxu0 0.0
    %1117 = vmatprep.subr.mxu0 0.0
    %1118 = vmatpush1.msra.mxu0 0.0
    %1119 = vmatprep.subr.mxu0 0.0
    %1120 = vmatpush1.msra.mxu0 0.0
    %1121 = vmatprep.subr.mxu0 0.0
    %1122 = vmatpush1.msra.mxu0 0.0
    %1123 = vmatprep.subr.mxu0 0.0
    %1124 = vmatpush1.msra.mxu0 0.0
    %1125 = vmatprep.subr.mxu0 0.0
    %1126 = vmatpush1.msra.mxu0 0.0
    %1127 = vmatprep.mubr.f32.mxu0 0.0
    %1128 = vmatmul.mubr.f32.gmra.mrb[0].mxu0 %v346
    %v1129 = vpop.f32.mrb[0].mxu0
    %v1130 = vadd.f32 %v1056, %v1129
    %v1131 = vpop.f32.mrb[0].mxu0
    %1132 = vmatprep.mubr.f32.mxu0 0.0
    %1133 = vmatmul.mubr.f32.gmra.mrb[0].mxu0 %v446
    %v1134 = vpop.f32.mrb[0].mxu0
    %v1135 = vadd.f32 %v1056, %v1134
    %v1136 = vpop.f32.mrb[0].mxu0
    %1137 = vmatprep.mubr.f32.mxu0 0.0
    %1138 = vmatmul.mubr.f32.gmra.mrb[0].mxu0 %v546
    %v1139 = vpop.f32.mrb[0].mxu0
    %v1140 = vadd.f32 %v1056, %v1139
    %v1141 = vpop.f32.mrb[0].mxu0
    %1142 = vmatprep.mubr.f32.mxu0 0.0
    %1143 = vmatmul.mubr.f32.gmra.mrb[0].mxu0 %v646
    %v1144 = vpop.f32.mrb[0].mxu0
    %v1145 = vadd.f32 %v1056, %v1144
    %v1146 = vpop.f32.mrb[0].mxu0
    %1147 = vmatprep.mubr.f32.mxu0 0.0
    %1148 = vmatmul.mubr.f32.gmra.mrb[0].mxu0 %v746
    %v1149 = vpop.f32.mrb[0].mxu0
    %v1150 = vadd.f32 %v1056, %v1149
    %v1151 = vpop.f32.mrb[0].mxu0
    %1152 = vmatprep.mubr.f32.mxu0 0.0
    %1153 = vmatmul.mubr.f32.gmra.mrb[0].mxu0 %v846
    %v1154 = vpop.f32.mrb[0].mxu0
    %v1155 = vadd.f32 %v1056, %v1154
    %v1156 = vpop.f32.mrb[0].mxu0
    %1157 = vmatprep.mubr.f32.mxu0 0.0
    %1158 = vmatmul.mubr.f32.gmra.mrb[0].mxu0 %v946
    %v1159 = vpop.f32.mrb[0].mxu0
    %v1160 = vadd.f32 %v1056, %v1159
    %v1161 = vpop.f32.mrb[0].mxu0
    %1162 = vmatprep.mubr.f32.mxu0 0.0
    %1163 = vmatmul.mubr.f32.gmra.mrb[0].mxu0 %v1061
    %v1164 = vpop.f32.mrb[0].mxu0
    %v1165 = vadd.f32 %v1056, %v1164
    %v1166 = vpop.f32.mrb[0].mxu0
    %1167 = vdwg.mxu0
    %1168 = vmatprep.subr.mxu0 0.0
    %1169 = vmatpush1.msra.mxu0 %v1047
    %1170 = vmatprep.subr.mxu0 0.0
    %1171 = vmatpush1.msra.mxu0 %v1048
    %1172 = vmatprep.subr.mxu0 0.0
    %1173 = vmatpush1.msra.mxu0 %v1049
    %1174 = vmatprep.subr.mxu0 0.0
    %1175 = vmatpush1.msra.mxu0 %v1050
    %1176 = vmatprep.subr.mxu0 0.0
    %1177 = vmatpush1.msra.mxu0 0.0
    %1178 = vmatprep.subr.mxu0 0.0
    %1179 = vmatpush1.msra.mxu0 0.0
    %1180 = vmatprep.subr.mxu0 0.0
    %1181 = vmatpush1.msra.mxu0 0.0
    %1182 = vmatprep.subr.mxu0 0.0
    %1183 = vmatpush1.msra.mxu0 0.0
    %1184 = vmatprep.subr.mxu0 0.0
    %1185 = vmatpush1.msra.mxu0 0.0
    %1186 = vmatprep.subr.mxu0 0.0
    %1187 = vmatpush1.msra.mxu0 0.0
    %1188 = vmatprep.subr.mxu0 0.0
    %1189 = vmatpush1.msra.mxu0 0.0
    %1190 = vmatprep.subr.mxu0 0.0
    %1191 = vmatpush1.msra.mxu0 0.0
    %1192 = vmatprep.subr.mxu0 0.0
    %1193 = vmatpush1.msra.mxu0 0.0
    %1194 = vmatprep.subr.mxu0 0.0
    %1195 = vmatpush1.msra.mxu0 0.0
    %1196 = vmatprep.subr.mxu0 0.0
    %1197 = vmatpush1.msra.mxu0 0.0
    %1198 = vmatprep.subr.mxu0 0.0
    %1199 = vmatpush1.msra.mxu0 0.0
    %1200 = vmatprep.subr.mxu0 0.0
    %1201 = vmatpush1.msra.mxu0 0.0
    %1202 = vmatprep.subr.mxu0 0.0
    %1203 = vmatpush1.msra.mxu0 0.0
    %1204 = vmatprep.subr.mxu0 0.0
    %1205 = vmatpush1.msra.mxu0 0.0
    %1206 = vmatprep.subr.mxu0 0.0
    %1207 = vmatpush1.msra.mxu0 0.0
    %1208 = vmatprep.subr.mxu0 0.0
    %1209 = vmatpush1.msra.mxu0 0.0
    %1210 = vmatprep.subr.mxu0 0.0
    %1211 = vmatpush1.msra.mxu0 0.0
    %1212 = vmatprep.subr.mxu0 0.0
    %1213 = vmatpush1.msra.mxu0 0.0
    %1214 = vmatprep.subr.mxu0 0.0
    %1215 = vmatpush1.msra.mxu0 0.0
    %1216 = vmatprep.subr.mxu0 0.0
    %1217 = vmatpush1.msra.mxu0 0.0
    %1218 = vmatprep.subr.mxu0 0.0
    %1219 = vmatpush1.msra.mxu0 0.0
    %1220 = vmatprep.subr.mxu0 0.0
    %1221 = vmatpush1.msra.mxu0 0.0
    %1222 = vmatprep.subr.mxu0 0.0
    %1223 = vmatpush1.msra.mxu0 0.0
    %1224 = vmatprep.subr.mxu0 0.0
    %1225 = vmatpush1.msra.mxu0 0.0
    %1226 = vmatprep.subr.mxu0 0.0
    %1227 = vmatpush1.msra.mxu0 0.0
    %1228 = vmatprep.subr.mxu0 0.0
    %1229 = vmatpush1.msra.mxu0 0.0
    %1230 = vmatprep.subr.mxu0 0.0
    %1231 = vmatpush1.msra.mxu0 0.0
    %1232 = vmatprep.mubr.f32.mxu0 0.0
    %1233 = vmatmul.mubr.f32.gmra.mrb[0].mxu0 %v246
    %v1234 = vpop.f32.mrb[0].mxu0
    %v1235 = vadd.f32 0.0, %v1234
    %v1236 = vpop.f32.mrb[0].mxu0
    %1237 = vdwg.mxu0
    %v1238 = vadd.f32 %v1130, %v1235
    %v1239 = vxor.u32 %v1238, 2147483648
    %v1240 = vmul.f32 %v1239, 1.442695
    %v1241 = vpow.pop %v1240
    %v1242 = vadd.f32 %v1241, 1.0
    %v1243 = vrcp.pop %v1242
    %v1244 = vmul.f32 1.0, %v1243
    %v1245 = vtanh.pop %v1238
    %v1246 = vmul.f32 %v1244, 0.0
    %1248 = vrot.lane.b32.xlu0 %v1245, 64
    %v1249 = vpop.permute.xlu0 %1248
    %v1251 = vmul.f32 %v1244, %v1249
    %1253 = vrot.lane.b32.xlu0 %v1251, 32
    %v1254 = vpop.permute.xlu0 %1253
    %v1256 = vadd.f32 %v1246, %v1254
    %v1257 = vtanh.pop %v1256
    %1259 = vrot.lane.b32.xlu0 %v1257, 64
    %v1260 = vpop.permute.xlu0 %1259
    %v1262 = vmul.f32 %v1244, %v1260
    %1264 = vrot.lane.b32.xlu0 %v1262, 32
    %v1265 = vpop.permute.xlu0 %1264
    %v1266 = vsel %vm244, %v1265, 0
    %1268 = vmatprep.subr.mxu0 0.0
    %1269 = vmatpush1.msra.mxu0 %v1047
    %1270 = vmatprep.subr.mxu0 0.0
    %1271 = vmatpush1.msra.mxu0 %v1048
    %1272 = vmatprep.subr.mxu0 0.0
    %1273 = vmatpush1.msra.mxu0 %v1049
    %1274 = vmatprep.subr.mxu0 0.0
    %1275 = vmatpush1.msra.mxu0 %v1050
    %1276 = vmatprep.subr.mxu0 0.0
    %1277 = vmatpush1.msra.mxu0 0.0
    %1278 = vmatprep.subr.mxu0 0.0
    %1279 = vmatpush1.msra.mxu0 0.0
    %1280 = vmatprep.subr.mxu0 0.0
    %1281 = vmatpush1.msra.mxu0 0.0
    %1282 = vmatprep.subr.mxu0 0.0
    %1283 = vmatpush1.msra.mxu0 0.0
    %1284 = vmatprep.subr.mxu0 0.0
    %1285 = vmatpush1.msra.mxu0 0.0
    %1286 = vmatprep.subr.mxu0 0.0
    %1287 = vmatpush1.msra.mxu0 0.0
    %1288 = vmatprep.subr.mxu0 0.0
    %1289 = vmatpush1.msra.mxu0 0.0
    %1290 = vmatprep.subr.mxu0 0.0
    %1291 = vmatpush1.msra.mxu0 0.0
    %1292 = vmatprep.subr.mxu0 0.0
    %1293 = vmatpush1.msra.mxu0 0.0
    %1294 = vmatprep.subr.mxu0 0.0
    %1295 = vmatpush1.msra.mxu0 0.0
    %1296 = vmatprep.subr.mxu0 0.0
    %1297 = vmatpush1.msra.mxu0 0.0
    %1298 = vmatprep.subr.mxu0 0.0
    %1299 = vmatpush1.msra.mxu0 0.0
    %1300 = vmatprep.subr.mxu0 0.0
    %1301 = vmatpush1.msra.mxu0 0.0
    %1302 = vmatprep.subr.mxu0 0.0
    %1303 = vmatpush1.msra.mxu0 0.0
    %1304 = vmatprep.subr.mxu0 0.0
    %1305 = vmatpush1.msra.mxu0 0.0
    %1306 = vmatprep.subr.mxu0 0.0
    %1307 = vmatpush1.msra.mxu0 0.0
    %1308 = vmatprep.subr.mxu0 0.0
    %1309 = vmatpush1.msra.mxu0 0.0
    %1310 = vmatprep.subr.mxu0 0.0
    %1311 = vmatpush1.msra.mxu0 0.0
    %1312 = vmatprep.subr.mxu0 0.0
    %1313 = vmatpush1.msra.mxu0 0.0
    %1314 = vmatprep.subr.mxu0 0.0
    %1315 = vmatpush1.msra.mxu0 0.0
    %1316 = vmatprep.subr.mxu0 0.0
    %1317 = vmatpush1.msra.mxu0 0.0
    %1318 = vmatprep.subr.mxu0 0.0
    %1319 = vmatpush1.msra.mxu0 0.0
    %1320 = vmatprep.subr.mxu0 0.0
    %1321 = vmatpush1.msra.mxu0 0.0
    %1322 = vmatprep.subr.mxu0 0.0
    %1323 = vmatpush1.msra.mxu0 0.0
    %1324 = vmatprep.subr.mxu0 0.0
    %1325 = vmatpush1.msra.mxu0 0.0
    %1326 = vmatprep.subr.mxu0 0.0
    %1327 = vmatpush1.msra.mxu0 0.0
    %1328 = vmatprep.subr.mxu0 0.0
    %1329 = vmatpush1.msra.mxu0 0.0
    %1330 = vmatprep.subr.mxu0 0.0
    %1331 = vmatpush1.msra.mxu0 0.0
    %1332 = vmatprep.mubr.f32.mxu0 0.0
    %1333 = vmatmul.mubr.f32.gmra.mrb[0].mxu0 %v1266
    %v1334 = vpop.f32.mrb[0].mxu0
    %v1335 = vadd.f32 0.0, %v1334
    %v1336 = vpop.f32.mrb[0].mxu0
    %1337 = vdwg.mxu0
    %v1338 = vadd.f32 %v1135, %v1335
    %v1339 = vxor.u32 %v1338, 2147483648
    %v1340 = vmul.f32 %v1339, 1.442695
    %v1341 = vpow.pop %v1340
    %v1342 = vadd.f32 %v1341, 1.0
    %v1343 = vrcp.pop %v1342
    %v1344 = vmul.f32 1.0, %v1343
    %v1345 = vtanh.pop %v1338
    %v1346 = vmul.f32 %v1344, %v1256
    %1348 = vrot.lane.b32.xlu0 %v1345, 64
    %v1349 = vpop.permute.xlu0 %1348
    %v1351 = vmul.f32 %v1344, %v1349
    %1353 = vrot.lane.b32.xlu0 %v1351, 32
    %v1354 = vpop.permute.xlu0 %1353
    %v1356 = vadd.f32 %v1346, %v1354
    %v1357 = vtanh.pop %v1356
    %1359 = vrot.lane.b32.xlu0 %v1357, 64
    %v1360 = vpop.permute.xlu0 %1359
    %v1362 = vmul.f32 %v1344, %v1360
    %1364 = vrot.lane.b32.xlu0 %v1362, 32
    %v1365 = vpop.permute.xlu0 %1364
    %v1366 = vsel %vm244, %v1365, 0
    %1368 = vmatprep.subr.mxu0 0.0
    %1369 = vmatpush1.msra.mxu0 %v1047
    %1370 = vmatprep.subr.mxu0 0.0
    %1371 = vmatpush1.msra.mxu0 %v1048
    %1372 = vmatprep.subr.mxu0 0.0
    %1373 = vmatpush1.msra.mxu0 %v1049
    %1374 = vmatprep.subr.mxu0 0.0
    %1375 = vmatpush1.msra.mxu0 %v1050
    %1376 = vmatprep.subr.mxu0 0.0
    %1377 = vmatpush1.msra.mxu0 0.0
    %1378 = vmatprep.subr.mxu0 0.0
    %1379 = vmatpush1.msra.mxu0 0.0
    %1380 = vmatprep.subr.mxu0 0.0
    %1381 = vmatpush1.msra.mxu0 0.0
    %1382 = vmatprep.subr.mxu0 0.0
    %1383 = vmatpush1.msra.mxu0 0.0
    %1384 = vmatprep.subr.mxu0 0.0
    %1385 = vmatpush1.msra.mxu0 0.0
    %1386 = vmatprep.subr.mxu0 0.0
    %1387 = vmatpush1.msra.mxu0 0.0
    %1388 = vmatprep.subr.mxu0 0.0
    %1389 = vmatpush1.msra.mxu0 0.0
    %1390 = vmatprep.subr.mxu0 0.0
    %1391 = vmatpush1.msra.mxu0 0.0
    %1392 = vmatprep.subr.mxu0 0.0
    %1393 = vmatpush1.msra.mxu0 0.0
    %1394 = vmatprep.subr.mxu0 0.0
    %1395 = vmatpush1.msra.mxu0 0.0
    %1396 = vmatprep.subr.mxu0 0.0
    %1397 = vmatpush1.msra.mxu0 0.0
    %1398 = vmatprep.subr.mxu0 0.0
    %1399 = vmatpush1.msra.mxu0 0.0
    %1400 = vmatprep.subr.mxu0 0.0
    %1401 = vmatpush1.msra.mxu0 0.0
    %1402 = vmatprep.subr.mxu0 0.0
    %1403 = vmatpush1.msra.mxu0 0.0
    %1404 = vmatprep.subr.mxu0 0.0
    %1405 = vmatpush1.msra.mxu0 0.0
    %1406 = vmatprep.subr.mxu0 0.0
    %1407 = vmatpush1.msra.mxu0 0.0
    %1408 = vmatprep.subr.mxu0 0.0
    %1409 = vmatpush1.msra.mxu0 0.0
    %1410 = vmatprep.subr.mxu0 0.0
    %1411 = vmatpush1.msra.mxu0 0.0
    %1412 = vmatprep.subr.mxu0 0.0
    %1413 = vmatpush1.msra.mxu0 0.0
    %1414 = vmatprep.subr.mxu0 0.0
    %1415 = vmatpush1.msra.mxu0 0.0
    %1416 = vmatprep.subr.mxu0 0.0
    %1417 = vmatpush1.msra.mxu0 0.0
    %1418 = vmatprep.subr.mxu0 0.0
    %1419 = vmatpush1.msra.mxu0 0.0
    %1420 = vmatprep.subr.mxu0 0.0
    %1421 = vmatpush1.msra.mxu0 0.0
    %1422 = vmatprep.subr.mxu0 0.0
    %1423 = vmatpush1.msra.mxu0 0.0
    %1424 = vmatprep.subr.mxu0 0.0
    %1425 = vmatpush1.msra.mxu0 0.0
    %1426 = vmatprep.subr.mxu0 0.0
    %1427 = vmatpush1.msra.mxu0 0.0
    %1428 = vmatprep.subr.mxu0 0.0
    %1429 = vmatpush1.msra.mxu0 0.0
    %1430 = vmatprep.subr.mxu0 0.0
    %1431 = vmatpush1.msra.mxu0 0.0
    %1432 = vmatprep.mubr.f32.mxu0 0.0
    %1433 = vmatmul.mubr.f32.gmra.mrb[0].mxu0 %v1366
    %v1434 = vpop.f32.mrb[0].mxu0
    %v1435 = vadd.f32 0.0, %v1434
    %v1436 = vpop.f32.mrb[0].mxu0
    %1437 = vdwg.mxu0
    %v1438 = vadd.f32 %v1140, %v1435
    %v1439 = vxor.u32 %v1438, 2147483648
    %v1440 = vmul.f32 %v1439, 1.442695
    %v1441 = vpow.pop %v1440
    %v1442 = vadd.f32 %v1441, 1.0
    %v1443 = vrcp.pop %v1442
    %v1444 = vmul.f32 1.0, %v1443
    %v1445 = vtanh.pop %v1438
    %v1446 = vmul.f32 %v1444, %v1356
    %1448 = vrot.lane.b32.xlu0 %v1445, 64
    %v1449 = vpop.permute.xlu0 %1448
    %v1451 = vmul.f32 %v1444, %v1449
    %1453 = vrot.lane.b32.xlu0 %v1451, 32
    %v1454 = vpop.permute.xlu0 %1453
    %v1456 = vadd.f32 %v1446, %v1454
    %v1457 = vtanh.pop %v1456
    %1459 = vrot.lane.b32.xlu0 %v1457, 64
    %v1460 = vpop.permute.xlu0 %1459
    %v1462 = vmul.f32 %v1444, %v1460
    %1464 = vrot.lane.b32.xlu0 %v1462, 32
    %v1465 = vpop.permute.xlu0 %1464
    %v1466 = vsel %vm244, %v1465, 0
    %1468 = vmatprep.subr.mxu0 0.0
    %1469 = vmatpush1.msra.mxu0 %v1047
    %1470 = vmatprep.subr.mxu0 0.0
    %1471 = vmatpush1.msra.mxu0 %v1048
    %1472 = vmatprep.subr.mxu0 0.0
    %1473 = vmatpush1.msra.mxu0 %v1049
    %1474 = vmatprep.subr.mxu0 0.0
    %1475 = vmatpush1.msra.mxu0 %v1050
    %1476 = vmatprep.subr.mxu0 0.0
    %1477 = vmatpush1.msra.mxu0 0.0
    %1478 = vmatprep.subr.mxu0 0.0
    %1479 = vmatpush1.msra.mxu0 0.0
    %1480 = vmatprep.subr.mxu0 0.0
    %1481 = vmatpush1.msra.mxu0 0.0
    %1482 = vmatprep.subr.mxu0 0.0
    %1483 = vmatpush1.msra.mxu0 0.0
    %1484 = vmatprep.subr.mxu0 0.0
    %1485 = vmatpush1.msra.mxu0 0.0
    %1486 = vmatprep.subr.mxu0 0.0
    %1487 = vmatpush1.msra.mxu0 0.0
    %1488 = vmatprep.subr.mxu0 0.0
    %1489 = vmatpush1.msra.mxu0 0.0
    %1490 = vmatprep.subr.mxu0 0.0
    %1491 = vmatpush1.msra.mxu0 0.0
    %1492 = vmatprep.subr.mxu0 0.0
    %1493 = vmatpush1.msra.mxu0 0.0
    %1494 = vmatprep.subr.mxu0 0.0
    %1495 = vmatpush1.msra.mxu0 0.0
    %1496 = vmatprep.subr.mxu0 0.0
    %1497 = vmatpush1.msra.mxu0 0.0
    %1498 = vmatprep.subr.mxu0 0.0
    %1499 = vmatpush1.msra.mxu0 0.0
    %1500 = vmatprep.subr.mxu0 0.0
    %1501 = vmatpush1.msra.mxu0 0.0
    %1502 = vmatprep.subr.mxu0 0.0
    %1503 = vmatpush1.msra.mxu0 0.0
    %1504 = vmatprep.subr.mxu0 0.0
    %1505 = vmatpush1.msra.mxu0 0.0
    %1506 = vmatprep.subr.mxu0 0.0
    %1507 = vmatpush1.msra.mxu0 0.0
    %1508 = vmatprep.subr.mxu0 0.0
    %1509 = vmatpush1.msra.mxu0 0.0
    %1510 = vmatprep.subr.mxu0 0.0
    %1511 = vmatpush1.msra.mxu0 0.0
    %1512 = vmatprep.subr.mxu0 0.0
    %1513 = vmatpush1.msra.mxu0 0.0
    %1514 = vmatprep.subr.mxu0 0.0
    %1515 = vmatpush1.msra.mxu0 0.0
    %1516 = vmatprep.subr.mxu0 0.0
    %1517 = vmatpush1.msra.mxu0 0.0
    %1518 = vmatprep.subr.mxu0 0.0
    %1519 = vmatpush1.msra.mxu0 0.0
    %1520 = vmatprep.subr.mxu0 0.0
    %1521 = vmatpush1.msra.mxu0 0.0
    %1522 = vmatprep.subr.mxu0 0.0
    %1523 = vmatpush1.msra.mxu0 0.0
    %1524 = vmatprep.subr.mxu0 0.0
    %1525 = vmatpush1.msra.mxu0 0.0
    %1526 = vmatprep.subr.mxu0 0.0
    %1527 = vmatpush1.msra.mxu0 0.0
    %1528 = vmatprep.subr.mxu0 0.0
    %1529 = vmatpush1.msra.mxu0 0.0
    %1530 = vmatprep.subr.mxu0 0.0
    %1531 = vmatpush1.msra.mxu0 0.0
    %1532 = vmatprep.mubr.f32.mxu0 0.0
    %1533 = vmatmul.mubr.f32.gmra.mrb[0].mxu0 %v1466
    %v1534 = vpop.f32.mrb[0].mxu0
    %v1535 = vadd.f32 0.0, %v1534
    %v1536 = vpop.f32.mrb[0].mxu0
    %1537 = vdwg.mxu0
    %v1538 = vadd.f32 %v1145, %v1535
    %v1539 = vxor.u32 %v1538, 2147483648
    %v1540 = vmul.f32 %v1539, 1.442695
    %v1541 = vpow.pop %v1540
    %v1542 = vadd.f32 %v1541, 1.0
    %v1543 = vrcp.pop %v1542
    %v1544 = vmul.f32 1.0, %v1543
    %v1545 = vtanh.pop %v1538
    %v1546 = vmul.f32 %v1544, %v1456
    %1548 = vrot.lane.b32.xlu0 %v1545, 64
    %v1549 = vpop.permute.xlu0 %1548
    %v1551 = vmul.f32 %v1544, %v1549
    %1553 = vrot.lane.b32.xlu0 %v1551, 32
    %v1554 = vpop.permute.xlu0 %1553
    %v1556 = vadd.f32 %v1546, %v1554
    %v1557 = vtanh.pop %v1556
    %1559 = vrot.lane.b32.xlu0 %v1557, 64
    %v1560 = vpop.permute.xlu0 %1559
    %v1562 = vmul.f32 %v1544, %v1560
    %1564 = vrot.lane.b32.xlu0 %v1562, 32
    %v1565 = vpop.permute.xlu0 %1564
    %v1566 = vsel %vm244, %v1565, 0
    %1568 = vmatprep.subr.mxu0 0.0
    %1569 = vmatpush1.msra.mxu0 %v1047
    %1570 = vmatprep.subr.mxu0 0.0
    %1571 = vmatpush1.msra.mxu0 %v1048
    %1572 = vmatprep.subr.mxu0 0.0
    %1573 = vmatpush1.msra.mxu0 %v1049
    %1574 = vmatprep.subr.mxu0 0.0
    %1575 = vmatpush1.msra.mxu0 %v1050
    %1576 = vmatprep.subr.mxu0 0.0
    %1577 = vmatpush1.msra.mxu0 0.0
    %1578 = vmatprep.subr.mxu0 0.0
    %1579 = vmatpush1.msra.mxu0 0.0
    %1580 = vmatprep.subr.mxu0 0.0
    %1581 = vmatpush1.msra.mxu0 0.0
    %1582 = vmatprep.subr.mxu0 0.0
    %1583 = vmatpush1.msra.mxu0 0.0
    %1584 = vmatprep.subr.mxu0 0.0
    %1585 = vmatpush1.msra.mxu0 0.0
    %1586 = vmatprep.subr.mxu0 0.0
    %1587 = vmatpush1.msra.mxu0 0.0
    %1588 = vmatprep.subr.mxu0 0.0
    %1589 = vmatpush1.msra.mxu0 0.0
    %1590 = vmatprep.subr.mxu0 0.0
    %1591 = vmatpush1.msra.mxu0 0.0
    %1592 = vmatprep.subr.mxu0 0.0
    %1593 = vmatpush1.msra.mxu0 0.0
    %1594 = vmatprep.subr.mxu0 0.0
    %1595 = vmatpush1.msra.mxu0 0.0
    %1596 = vmatprep.subr.mxu0 0.0
    %1597 = vmatpush1.msra.mxu0 0.0
    %1598 = vmatprep.subr.mxu0 0.0
    %1599 = vmatpush1.msra.mxu0 0.0
    %1600 = vmatprep.subr.mxu0 0.0
    %1601 = vmatpush1.msra.mxu0 0.0
    %1602 = vmatprep.subr.mxu0 0.0
    %1603 = vmatpush1.msra.mxu0 0.0
    %1604 = vmatprep.subr.mxu0 0.0
    %1605 = vmatpush1.msra.mxu0 0.0
    %1606 = vmatprep.subr.mxu0 0.0
    %1607 = vmatpush1.msra.mxu0 0.0
    %1608 = vmatprep.subr.mxu0 0.0
    %1609 = vmatpush1.msra.mxu0 0.0
    %1610 = vmatprep.subr.mxu0 0.0
    %1611 = vmatpush1.msra.mxu0 0.0
    %1612 = vmatprep.subr.mxu0 0.0
    %1613 = vmatpush1.msra.mxu0 0.0
    %1614 = vmatprep.subr.mxu0 0.0
    %1615 = vmatpush1.msra.mxu0 0.0
    %1616 = vmatprep.subr.mxu0 0.0
    %1617 = vmatpush1.msra.mxu0 0.0
    %1618 = vmatprep.subr.mxu0 0.0
    %1619 = vmatpush1.msra.mxu0 0.0
    %1620 = vmatprep.subr.mxu0 0.0
    %1621 = vmatpush1.msra.mxu0 0.0
    %1622 = vmatprep.subr.mxu0 0.0
    %1623 = vmatpush1.msra.mxu0 0.0
    %1624 = vmatprep.subr.mxu0 0.0
    %1625 = vmatpush1.msra.mxu0 0.0
    %1626 = vmatprep.subr.mxu0 0.0
    %1627 = vmatpush1.msra.mxu0 0.0
    %1628 = vmatprep.subr.mxu0 0.0
    %1629 = vmatpush1.msra.mxu0 0.0
    %1630 = vmatprep.subr.mxu0 0.0
    %1631 = vmatpush1.msra.mxu0 0.0
    %1632 = vmatprep.mubr.f32.mxu0 0.0
    %1633 = vmatmul.mubr.f32.gmra.mrb[0].mxu0 %v1566
    %v1634 = vpop.f32.mrb[0].mxu0
    %v1635 = vadd.f32 0.0, %v1634
    %v1636 = vpop.f32.mrb[0].mxu0
    %1637 = vdwg.mxu0
    %v1638 = vadd.f32 %v1150, %v1635
    %v1639 = vxor.u32 %v1638, 2147483648
    %v1640 = vmul.f32 %v1639, 1.442695
    %v1641 = vpow.pop %v1640
    %v1642 = vadd.f32 %v1641, 1.0
    %v1643 = vrcp.pop %v1642
    %v1644 = vmul.f32 1.0, %v1643
    %v1645 = vtanh.pop %v1638
    %v1646 = vmul.f32 %v1644, %v1556
    %1648 = vrot.lane.b32.xlu0 %v1645, 64
    %v1649 = vpop.permute.xlu0 %1648
    %v1651 = vmul.f32 %v1644, %v1649
    %1653 = vrot.lane.b32.xlu0 %v1651, 32
    %v1654 = vpop.permute.xlu0 %1653
    %v1656 = vadd.f32 %v1646, %v1654
    %v1657 = vtanh.pop %v1656
    %1659 = vrot.lane.b32.xlu0 %v1657, 64
    %v1660 = vpop.permute.xlu0 %1659
    %v1662 = vmul.f32 %v1644, %v1660
    %1664 = vrot.lane.b32.xlu0 %v1662, 32
    %v1665 = vpop.permute.xlu0 %1664
    %v1666 = vsel %vm244, %v1665, 0
    %1668 = vmatprep.subr.mxu0 0.0
    %1669 = vmatpush1.msra.mxu0 %v1047
    %1670 = vmatprep.subr.mxu0 0.0
    %1671 = vmatpush1.msra.mxu0 %v1048
    %1672 = vmatprep.subr.mxu0 0.0
    %1673 = vmatpush1.msra.mxu0 %v1049
    %1674 = vmatprep.subr.mxu0 0.0
    %1675 = vmatpush1.msra.mxu0 %v1050
    %1676 = vmatprep.subr.mxu0 0.0
    %1677 = vmatpush1.msra.mxu0 0.0
    %1678 = vmatprep.subr.mxu0 0.0
    %1679 = vmatpush1.msra.mxu0 0.0
    %1680 = vmatprep.subr.mxu0 0.0
    %1681 = vmatpush1.msra.mxu0 0.0
    %1682 = vmatprep.subr.mxu0 0.0
    %1683 = vmatpush1.msra.mxu0 0.0
    %1684 = vmatprep.subr.mxu0 0.0
    %1685 = vmatpush1.msra.mxu0 0.0
    %1686 = vmatprep.subr.mxu0 0.0
    %1687 = vmatpush1.msra.mxu0 0.0
    %1688 = vmatprep.subr.mxu0 0.0
    %1689 = vmatpush1.msra.mxu0 0.0
    %1690 = vmatprep.subr.mxu0 0.0
    %1691 = vmatpush1.msra.mxu0 0.0
    %1692 = vmatprep.subr.mxu0 0.0
    %1693 = vmatpush1.msra.mxu0 0.0
    %1694 = vmatprep.subr.mxu0 0.0
    %1695 = vmatpush1.msra.mxu0 0.0
    %1696 = vmatprep.subr.mxu0 0.0
    %1697 = vmatpush1.msra.mxu0 0.0
    %1698 = vmatprep.subr.mxu0 0.0
    %1699 = vmatpush1.msra.mxu0 0.0
    %1700 = vmatprep.subr.mxu0 0.0
    %1701 = vmatpush1.msra.mxu0 0.0
    %1702 = vmatprep.subr.mxu0 0.0
    %1703 = vmatpush1.msra.mxu0 0.0
    %1704 = vmatprep.subr.mxu0 0.0
    %1705 = vmatpush1.msra.mxu0 0.0
    %1706 = vmatprep.subr.mxu0 0.0
    %1707 = vmatpush1.msra.mxu0 0.0
    %1708 = vmatprep.subr.mxu0 0.0
    %1709 = vmatpush1.msra.mxu0 0.0
    %1710 = vmatprep.subr.mxu0 0.0
    %1711 = vmatpush1.msra.mxu0 0.0
    %1712 = vmatprep.subr.mxu0 0.0
    %1713 = vmatpush1.msra.mxu0 0.0
    %1714 = vmatprep.subr.mxu0 0.0
    %1715 = vmatpush1.msra.mxu0 0.0
    %1716 = vmatprep.subr.mxu0 0.0
    %1717 = vmatpush1.msra.mxu0 0.0
    %1718 = vmatprep.subr.mxu0 0.0
    %1719 = vmatpush1.msra.mxu0 0.0
    %1720 = vmatprep.subr.mxu0 0.0
    %1721 = vmatpush1.msra.mxu0 0.0
    %1722 = vmatprep.subr.mxu0 0.0
    %1723 = vmatpush1.msra.mxu0 0.0
    %1724 = vmatprep.subr.mxu0 0.0
    %1725 = vmatpush1.msra.mxu0 0.0
    %1726 = vmatprep.subr.mxu0 0.0
    %1727 = vmatpush1.msra.mxu0 0.0
    %1728 = vmatprep.subr.mxu0 0.0
    %1729 = vmatpush1.msra.mxu0 0.0
    %1730 = vmatprep.subr.mxu0 0.0
    %1731 = vmatpush1.msra.mxu0 0.0
    %1732 = vmatprep.mubr.f32.mxu0 0.0
    %1733 = vmatmul.mubr.f32.gmra.mrb[0].mxu0 %v1666
    %v1734 = vpop.f32.mrb[0].mxu0
    %v1735 = vadd.f32 0.0, %v1734
    %v1736 = vpop.f32.mrb[0].mxu0
    %1737 = vdwg.mxu0
    %v1738 = vadd.f32 %v1155, %v1735
    %v1739 = vxor.u32 %v1738, 2147483648
    %v1740 = vmul.f32 %v1739, 1.442695
    %v1741 = vpow.pop %v1740
    %v1742 = vadd.f32 %v1741, 1.0
    %v1743 = vrcp.pop %v1742
    %v1744 = vmul.f32 1.0, %v1743
    %v1745 = vtanh.pop %v1738
    %v1746 = vmul.f32 %v1744, %v1656
    %1748 = vrot.lane.b32.xlu0 %v1745, 64
    %v1749 = vpop.permute.xlu0 %1748
    %v1751 = vmul.f32 %v1744, %v1749
    %1753 = vrot.lane.b32.xlu0 %v1751, 32
    %v1754 = vpop.permute.xlu0 %1753
    %v1756 = vadd.f32 %v1746, %v1754
    %v1757 = vtanh.pop %v1756
    %1759 = vrot.lane.b32.xlu0 %v1757, 64
    %v1760 = vpop.permute.xlu0 %1759
    %v1762 = vmul.f32 %v1744, %v1760
    %1764 = vrot.lane.b32.xlu0 %v1762, 32
    %v1765 = vpop.permute.xlu0 %1764
    %v1766 = vsel %vm244, %v1765, 0
    %1768 = vmatprep.subr.mxu0 0.0
    %1769 = vmatpush1.msra.mxu0 %v1047
    %1770 = vmatprep.subr.mxu0 0.0
    %1771 = vmatpush1.msra.mxu0 %v1048
    %1772 = vmatprep.subr.mxu0 0.0
    %1773 = vmatpush1.msra.mxu0 %v1049
    %1774 = vmatprep.subr.mxu0 0.0
    %1775 = vmatpush1.msra.mxu0 %v1050
    %1776 = vmatprep.subr.mxu0 0.0
    %1777 = vmatpush1.msra.mxu0 0.0
    %1778 = vmatprep.subr.mxu0 0.0
    %1779 = vmatpush1.msra.mxu0 0.0
    %1780 = vmatprep.subr.mxu0 0.0
    %1781 = vmatpush1.msra.mxu0 0.0
    %1782 = vmatprep.subr.mxu0 0.0
    %1783 = vmatpush1.msra.mxu0 0.0
    %1784 = vmatprep.subr.mxu0 0.0
    %1785 = vmatpush1.msra.mxu0 0.0
    %1786 = vmatprep.subr.mxu0 0.0
    %1787 = vmatpush1.msra.mxu0 0.0
    %1788 = vmatprep.subr.mxu0 0.0
    %1789 = vmatpush1.msra.mxu0 0.0
    %1790 = vmatprep.subr.mxu0 0.0
    %1791 = vmatpush1.msra.mxu0 0.0
    %1792 = vmatprep.subr.mxu0 0.0
    %1793 = vmatpush1.msra.mxu0 0.0
    %1794 = vmatprep.subr.mxu0 0.0
    %1795 = vmatpush1.msra.mxu0 0.0
    %1796 = vmatprep.subr.mxu0 0.0
    %1797 = vmatpush1.msra.mxu0 0.0
    %1798 = vmatprep.subr.mxu0 0.0
    %1799 = vmatpush1.msra.mxu0 0.0
    %1800 = vmatprep.subr.mxu0 0.0
    %1801 = vmatpush1.msra.mxu0 0.0
    %1802 = vmatprep.subr.mxu0 0.0
    %1803 = vmatpush1.msra.mxu0 0.0
    %1804 = vmatprep.subr.mxu0 0.0
    %1805 = vmatpush1.msra.mxu0 0.0
    %1806 = vmatprep.subr.mxu0 0.0
    %1807 = vmatpush1.msra.mxu0 0.0
    %1808 = vmatprep.subr.mxu0 0.0
    %1809 = vmatpush1.msra.mxu0 0.0
    %1810 = vmatprep.subr.mxu0 0.0
    %1811 = vmatpush1.msra.mxu0 0.0
    %1812 = vmatprep.subr.mxu0 0.0
    %1813 = vmatpush1.msra.mxu0 0.0
    %1814 = vmatprep.subr.mxu0 0.0
    %1815 = vmatpush1.msra.mxu0 0.0
    %1816 = vmatprep.subr.mxu0 0.0
    %1817 = vmatpush1.msra.mxu0 0.0
    %1818 = vmatprep.subr.mxu0 0.0
    %1819 = vmatpush1.msra.mxu0 0.0
    %1820 = vmatprep.subr.mxu0 0.0
    %1821 = vmatpush1.msra.mxu0 0.0
    %1822 = vmatprep.subr.mxu0 0.0
    %1823 = vmatpush1.msra.mxu0 0.0
    %1824 = vmatprep.subr.mxu0 0.0
    %1825 = vmatpush1.msra.mxu0 0.0
    %1826 = vmatprep.subr.mxu0 0.0
    %1827 = vmatpush1.msra.mxu0 0.0
    %1828 = vmatprep.subr.mxu0 0.0
    %1829 = vmatpush1.msra.mxu0 0.0
    %1830 = vmatprep.subr.mxu0 0.0
    %1831 = vmatpush1.msra.mxu0 0.0
    %1832 = vmatprep.mubr.f32.mxu0 0.0
    %1833 = vmatmul.mubr.f32.gmra.mrb[0].mxu0 %v1766
    %v1834 = vpop.f32.mrb[0].mxu0
    %v1835 = vadd.f32 0.0, %v1834
    %v1836 = vpop.f32.mrb[0].mxu0
    %1837 = vdwg.mxu0
    %v1838 = vadd.f32 %v1160, %v1835
    %v1839 = vxor.u32 %v1838, 2147483648
    %v1840 = vmul.f32 %v1839, 1.442695
    %v1841 = vpow.pop %v1840
    %v1842 = vadd.f32 %v1841, 1.0
    %v1843 = vrcp.pop %v1842
    %v1844 = vmul.f32 1.0, %v1843
    %v1845 = vtanh.pop %v1838
    %v1846 = vmul.f32 %v1844, %v1756
    %1848 = vrot.lane.b32.xlu0 %v1845, 64
    %v1849 = vpop.permute.xlu0 %1848
    %v1851 = vmul.f32 %v1844, %v1849
    %1853 = vrot.lane.b32.xlu0 %v1851, 32
    %v1854 = vpop.permute.xlu0 %1853
    %v1856 = vadd.f32 %v1846, %v1854
    %v1857 = vtanh.pop %v1856
    %1859 = vrot.lane.b32.xlu0 %v1857, 64
    %v1860 = vpop.permute.xlu0 %1859
    %v1862 = vmul.f32 %v1844, %v1860
    %1864 = vrot.lane.b32.xlu0 %v1862, 32
    %v1865 = vpop.permute.xlu0 %1864
    %v1866 = vsel %vm244, %v1865, 0
    %1868 = vmatprep.subr.mxu0 0.0
    %1869 = vmatpush1.msra.mxu0 %v1047
    %1870 = vmatprep.subr.mxu0 0.0
    %1871 = vmatpush1.msra.mxu0 %v1048
    %1872 = vmatprep.subr.mxu0 0.0
    %1873 = vmatpush1.msra.mxu0 %v1049
    %1874 = vmatprep.subr.mxu0 0.0
    %1875 = vmatpush1.msra.mxu0 %v1050
    %1876 = vmatprep.subr.mxu0 0.0
    %1877 = vmatpush1.msra.mxu0 0.0
    %1878 = vmatprep.subr.mxu0 0.0
    %1879 = vmatpush1.msra.mxu0 0.0
    %1880 = vmatprep.subr.mxu0 0.0
    %1881 = vmatpush1.msra.mxu0 0.0
    %1882 = vmatprep.subr.mxu0 0.0
    %1883 = vmatpush1.msra.mxu0 0.0
    %1884 = vmatprep.subr.mxu0 0.0
    %1885 = vmatpush1.msra.mxu0 0.0
    %1886 = vmatprep.subr.mxu0 0.0
    %1887 = vmatpush1.msra.mxu0 0.0
    %1888 = vmatprep.subr.mxu0 0.0
    %1889 = vmatpush1.msra.mxu0 0.0
    %1890 = vmatprep.subr.mxu0 0.0
    %1891 = vmatpush1.msra.mxu0 0.0
    %1892 = vmatprep.subr.mxu0 0.0
    %1893 = vmatpush1.msra.mxu0 0.0
    %1894 = vmatprep.subr.mxu0 0.0
    %1895 = vmatpush1.msra.mxu0 0.0
    %1896 = vmatprep.subr.mxu0 0.0
    %1897 = vmatpush1.msra.mxu0 0.0
    %1898 = vmatprep.subr.mxu0 0.0
    %1899 = vmatpush1.msra.mxu0 0.0
    %1900 = vmatprep.subr.mxu0 0.0
    %1901 = vmatpush1.msra.mxu0 0.0
    %1902 = vmatprep.subr.mxu0 0.0
    %1903 = vmatpush1.msra.mxu0 0.0
    %1904 = vmatprep.subr.mxu0 0.0
    %1905 = vmatpush1.msra.mxu0 0.0
    %1906 = vmatprep.subr.mxu0 0.0
    %1907 = vmatpush1.msra.mxu0 0.0
    %1908 = vmatprep.subr.mxu0 0.0
    %1909 = vmatpush1.msra.mxu0 0.0
    %1910 = vmatprep.subr.mxu0 0.0
    %1911 = vmatpush1.msra.mxu0 0.0
    %1912 = vmatprep.subr.mxu0 0.0
    %1913 = vmatpush1.msra.mxu0 0.0
    %1914 = vmatprep.subr.mxu0 0.0
    %1915 = vmatpush1.msra.mxu0 0.0
    %1916 = vmatprep.subr.mxu0 0.0
    %1917 = vmatpush1.msra.mxu0 0.0
    %1918 = vmatprep.subr.mxu0 0.0
    %1919 = vmatpush1.msra.mxu0 0.0
    %1920 = vmatprep.subr.mxu0 0.0
    %1921 = vmatpush1.msra.mxu0 0.0
    %1922 = vmatprep.subr.mxu0 0.0
    %1923 = vmatpush1.msra.mxu0 0.0
    %1924 = vmatprep.subr.mxu0 0.0
    %1925 = vmatpush1.msra.mxu0 0.0
    %1926 = vmatprep.subr.mxu0 0.0
    %1927 = vmatpush1.msra.mxu0 0.0
    %1928 = vmatprep.subr.mxu0 0.0
    %1929 = vmatpush1.msra.mxu0 0.0
    %1930 = vmatprep.subr.mxu0 0.0
    %1931 = vmatpush1.msra.mxu0 0.0
    %1932 = vmatprep.mubr.f32.mxu0 0.0
    %1933 = vmatmul.mubr.f32.gmra.mrb[0].mxu0 %v1866
    %v1934 = vpop.f32.mrb[0].mxu0
    %v1935 = vadd.f32 0.0, %v1934
    %v1936 = vpop.f32.mrb[0].mxu0
    %1937 = vdwg.mxu0
    %v1938 = vadd.f32 %v1165, %v1935
    %v1939 = vxor.u32 %v1938, 2147483648
    %v1940 = vmul.f32 %v1939, 1.442695
    %v1941 = vpow.pop %v1940
    %v1942 = vadd.f32 %v1941, 1.0
    %v1943 = vrcp.pop %v1942
    %v1944 = vmul.f32 1.0, %v1943
    %v1945 = vtanh.pop %v1938
    %v1946 = vmul.f32 %v1944, %v1856
    %1948 = vrot.lane.b32.xlu0 %v1945, 64
    %v1949 = vpop.permute.xlu0 %1948
    %v1951 = vmul.f32 %v1944, %v1949
    %1953 = vrot.lane.b32.xlu0 %v1951, 32
    %v1954 = vpop.permute.xlu0 %1953
    %v1956 = vadd.f32 %v1946, %v1954
    %v1957 = vtanh.pop %v1956
    %1959 = vrot.lane.b32.xlu0 %v1957, 64
    %v1960 = vpop.permute.xlu0 %1959
    %v1962 = vmul.f32 %v1944, %v1960
    %v1963 = vld [vmem:[#allocation7] sm:$0xff]
    %v1964 = vld [vmem:[#allocation7 + $0x8] sm:$0xff]
    %v1965 = vld [vmem:[#allocation7 + $0x10] sm:$0xff]
    %v1966 = vld [vmem:[#allocation7 + $0x18] sm:$0xff]
    %v1967 = vld [vmem:[#allocation8] sm:$0x1]
    %v1968 = vld [vmem:[%s9] sm:$0xff]
    %v1969 = vld [vmem:[%s9 + $0x8] sm:$0xff]
    %v1970 = vld [vmem:[%s9 + $0x10] sm:$0xff]
    %v1971 = vld [vmem:[%s9 + $0x18] sm:$0xff]
    %v1972 = vld [vmem:[%s10] sm:$0x1]
    %v1974 = vlaneseq
    %v1975 = vshrl.u32 %v1974, 7
    %v1976 = vsub.s32 0, %v1975
    %v1977 = vrot.slane %v1967, %v1976
    %1980 = vrot.lane.b32.xlu0 %v1962, 32
    %v1981 = vpop.permute.xlu0 %1980
    %v1982 = vsel %vm244, %v1981, 0
    %1984 = vmatprep.subr.mxu0 0.0
    %1985 = vmatpush1.msra.mxu0 %v1963
    %1986 = vmatprep.subr.mxu0 0.0
    %1987 = vmatpush1.msra.mxu0 %v1964
    %1988 = vmatprep.subr.mxu0 0.0
    %1989 = vmatpush1.msra.mxu0 %v1965
    %1990 = vmatprep.subr.mxu0 0.0
    %1991 = vmatpush1.msra.mxu0 %v1966
    %1992 = vmatprep.subr.mxu0 0.0
    %1993 = vmatpush1.msra.mxu0 0.0
    %1994 = vmatprep.subr.mxu0 0.0
    %1995 = vmatpush1.msra.mxu0 0.0
    %1996 = vmatprep.subr.mxu0 0.0
    %1997 = vmatpush1.msra.mxu0 0.0
    %1998 = vmatprep.subr.mxu0 0.0
    %1999 = vmatpush1.msra.mxu0 0.0
    %2000 = vmatprep.subr.mxu0 0.0
    %2001 = vmatpush1.msra.mxu0 0.0
    %2002 = vmatprep.subr.mxu0 0.0
    %2003 = vmatpush1.msra.mxu0 0.0
    %2004 = vmatprep.subr.mxu0 0.0
    %2005 = vmatpush1.msra.mxu0 0.0
    %2006 = vmatprep.subr.mxu0 0.0
    %2007 = vmatpush1.msra.mxu0 0.0
    %2008 = vmatprep.subr.mxu0 0.0
    %2009 = vmatpush1.msra.mxu0 0.0
    %2010 = vmatprep.subr.mxu0 0.0
    %2011 = vmatpush1.msra.mxu0 0.0
    %2012 = vmatprep.subr.mxu0 0.0
    %2013 = vmatpush1.msra.mxu0 0.0
    %2014 = vmatprep.subr.mxu0 0.0
    %2015 = vmatpush1.msra.mxu0 0.0
    %2016 = vmatprep.subr.mxu0 0.0
    %2017 = vmatpush1.msra.mxu0 0.0
    %2018 = vmatprep.subr.mxu0 0.0
    %2019 = vmatpush1.msra.mxu0 0.0
    %2020 = vmatprep.subr.mxu0 0.0
    %2021 = vmatpush1.msra.mxu0 0.0
    %2022 = vmatprep.subr.mxu0 0.0
    %2023 = vmatpush1.msra.mxu0 0.0
    %2024 = vmatprep.subr.mxu0 0.0
    %2025 = vmatpush1.msra.mxu0 0.0
    %2026 = vmatprep.subr.mxu0 0.0
    %2027 = vmatpush1.msra.mxu0 0.0
    %2028 = vmatprep.subr.mxu0 0.0
    %2029 = vmatpush1.msra.mxu0 0.0
    %2030 = vmatprep.subr.mxu0 0.0
    %2031 = vmatpush1.msra.mxu0 0.0
    %2032 = vmatprep.subr.mxu0 0.0
    %2033 = vmatpush1.msra.mxu0 0.0
    %2034 = vmatprep.subr.mxu0 0.0
    %2035 = vmatpush1.msra.mxu0 0.0
    %2036 = vmatprep.subr.mxu0 0.0
    %2037 = vmatpush1.msra.mxu0 0.0
    %2038 = vmatprep.subr.mxu0 0.0
    %2039 = vmatpush1.msra.mxu0 0.0
    %2040 = vmatprep.subr.mxu0 0.0
    %2041 = vmatpush1.msra.mxu0 0.0
    %2042 = vmatprep.subr.mxu0 0.0
    %2043 = vmatpush1.msra.mxu0 0.0
    %2044 = vmatprep.subr.mxu0 0.0
    %2045 = vmatpush1.msra.mxu0 0.0
    %2046 = vmatprep.subr.mxu0 0.0
    %2047 = vmatpush1.msra.mxu0 0.0
    %2048 = vmatprep.mubr.f32.mxu0 0.0
    %2049 = vmatmul.mubr.f32.gmra.mrb[0].mxu0 %v1982
    %v2050 = vpop.f32.mrb[0].mxu0
    %v2051 = vadd.f32 %v1977, %v2050
    %v2052 = vpop.f32.mrb[0].mxu0
    %2053 = vdwg.mxu0
    %v2054 = vmax.f32 %v2051, 0.0
    %v2056 = vlaneseq
    %v2057 = vshrl.u32 %v2056, 7
    %v2058 = vsub.s32 0, %v2057
    %v2059 = vrot.slane %v1972, %v2058
    %v2062 = vsel %vm244, %v2054, 0
    %2064 = vmatprep.subr.mxu0 0.0
    %2065 = vmatpush1.msra.mxu0 %v1968
    %2066 = vmatprep.subr.mxu0 0.0
    %2067 = vmatpush1.msra.mxu0 %v1969
    %2068 = vmatprep.subr.mxu0 0.0
    %2069 = vmatpush1.msra.mxu0 %v1970
    %2070 = vmatprep.subr.mxu0 0.0
    %2071 = vmatpush1.msra.mxu0 %v1971
    %2072 = vmatprep.subr.mxu0 0.0
    %2073 = vmatpush1.msra.mxu0 0.0
    %2074 = vmatprep.subr.mxu0 0.0
    %2075 = vmatpush1.msra.mxu0 0.0
    %2076 = vmatprep.subr.mxu0 0.0
    %2077 = vmatpush1.msra.mxu0 0.0
    %2078 = vmatprep.subr.mxu0 0.0
    %2079 = vmatpush1.msra.mxu0 0.0
    %2080 = vmatprep.subr.mxu0 0.0
    %2081 = vmatpush1.msra.mxu0 0.0
    %2082 = vmatprep.subr.mxu0 0.0
    %2083 = vmatpush1.msra.mxu0 0.0
    %2084 = vmatprep.subr.mxu0 0.0
    %2085 = vmatpush1.msra.mxu0 0.0
    %2086 = vmatprep.subr.mxu0 0.0
    %2087 = vmatpush1.msra.mxu0 0.0
    %2088 = vmatprep.subr.mxu0 0.0
    %2089 = vmatpush1.msra.mxu0 0.0
    %2090 = vmatprep.subr.mxu0 0.0
    %2091 = vmatpush1.msra.mxu0 0.0
    %2092 = vmatprep.subr.mxu0 0.0
    %2093 = vmatpush1.msra.mxu0 0.0
    %2094 = vmatprep.subr.mxu0 0.0
    %2095 = vmatpush1.msra.mxu0 0.0
    %2096 = vmatprep.subr.mxu0 0.0
    %2097 = vmatpush1.msra.mxu0 0.0
    %2098 = vmatprep.subr.mxu0 0.0
    %2099 = vmatpush1.msra.mxu0 0.0
    %2100 = vmatprep.subr.mxu0 0.0
    %2101 = vmatpush1.msra.mxu0 0.0
    %2102 = vmatprep.subr.mxu0 0.0
    %2103 = vmatpush1.msra.mxu0 0.0
    %2104 = vmatprep.subr.mxu0 0.0
    %2105 = vmatpush1.msra.mxu0 0.0
    %2106 = vmatprep.subr.mxu0 0.0
    %2107 = vmatpush1.msra.mxu0 0.0
    %2108 = vmatprep.subr.mxu0 0.0
    %2109 = vmatpush1.msra.mxu0 0.0
    %2110 = vmatprep.subr.mxu0 0.0
    %2111 = vmatpush1.msra.mxu0 0.0
    %2112 = vmatprep.subr.mxu0 0.0
    %2113 = vmatpush1.msra.mxu0 0.0
    %2114 = vmatprep.subr.mxu0 0.0
    %2115 = vmatpush1.msra.mxu0 0.0
    %2116 = vmatprep.subr.mxu0 0.0
    %2117 = vmatpush1.msra.mxu0 0.0
    %2118 = vmatprep.subr.mxu0 0.0
    %2119 = vmatpush1.msra.mxu0 0.0
    %2120 = vmatprep.subr.mxu0 0.0
    %2121 = vmatpush1.msra.mxu0 0.0
    %2122 = vmatprep.subr.mxu0 0.0
    %2123 = vmatpush1.msra.mxu0 0.0
    %2124 = vmatprep.subr.mxu0 0.0
    %2125 = vmatpush1.msra.mxu0 0.0
    %2126 = vmatprep.subr.mxu0 0.0
    %2127 = vmatpush1.msra.mxu0 0.0
    %2128 = vmatprep.mubr.f32.mxu0 0.0
    %2129 = vmatmul.mubr.f32.gmra.mrb[0].mxu0 %v2062
    %v2130 = vpop.f32.mrb[0].mxu0
    %v2131 = vadd.f32 %v2059, %v2130
    %v2132 = vpop.f32.mrb[0].mxu0
    %2133 = vdwg.mxu0
    %2134 = vst [vmem:[#allocation10] sm:$0xff] %v2131
    // Predicated region
    $region62: #{tpu_custom_call.1} parent=1 // pred_check
      _
    $region63: #{tpu_custom_call.1} parent=1 // pred_check_branch
      %2136 = sbr.rel (0) target = $region65
    $region64: #{tpu_custom_call.1} parent=1 // pred_region
      %s2138 = ssub.s32 128, 128
      %2139 = vsyncadd [#allocation4], %s2138
      %s2141 = sshll.u32 [#allocation10], 4
      %s2142 = int_to_ptr.vmem [resolvable:$true] %s2141
      %2144 = dma.vmem_to_hbm [thread:$0]  %s2142, 128, %s11, [#allocation4]
    $region65: #{tpu_custom_call.1} parent=1 // pred_fallthru
      _
    // Predicated region
    $region66: #{tpu_custom_call.1} parent=1 // pred_check
      _
    $region67: #{tpu_custom_call.1} parent=1 // pred_check_branch
      %2146 = sbr.rel (0) target = $region69
    $region68: #{tpu_custom_call.1} parent=1 // pred_region
      %2147 = dma.done [#allocation4], 128
    $region69: #{tpu_custom_call.1} parent=1 // pred_fallthru
      _
    %2148 = vsyncpa [#allocation3], 1
    %2149 = vsyncpa [#allocation6], 1
    %2150 = vsyncpa [#allocation9], 1
    %2151 = vsyncpa [#allocation4], 1

</llo_original>
